<compile_context>
chip_gen: v7x
topology: tpu7x:2x2x1
jax: 0.10.0
libtpu: 0.0.40
codegen_flags: <defaults>
</compile_context>

<pallas_src>
import jax
import jax.numpy as jnp
from jax.experimental import pallas as pl
from jax.experimental.pallas import tpu as pltpu


def neuralnet_kernel(x_ref, w1_ref, b1_ref, w2_ref, b2_ref, w3_ref, b3_ref,
                     w4_ref, b4_ref, w5_ref, b5_ref, w6_ref, b6_ref, out_ref):
    f32 = jnp.float32
    x = x_ref[...]                                                  # (D, TB)

    # conv1 (1x1) + relu
    h1 = jnp.maximum(
        jnp.dot(w1_ref[...], x, preferred_element_type=f32) + b1_ref[...],
        0.0)                                                        # (32, TB)

    # conv2 (k=3, pad=3 on L=1) + relu + maxpool1d(7, pad=3) + relu
    # One fused (288, 32) matmul for all three taps, then max over slices.
    z2 = jnp.dot(w2_ref[...], h1, preferred_element_type=f32)       # (288, TB)
    s2 = jnp.maximum(jnp.maximum(z2[0:96], z2[96:192]), z2[192:288])
    h2 = jnp.maximum(jnp.maximum(s2, 0.0) + b2_ref[...], 0.0)       # (96, TB)

    # conv3 (k=3, pad=3 on L=1) + relu + maxpool1d(7, pad=3) + relu
    z3 = jnp.dot(w3_ref[...], h2, preferred_element_type=f32)       # (288, TB)
    s3 = jnp.maximum(jnp.maximum(z3[0:96], z3[96:192]), z3[192:288])
    h3 = jnp.maximum(jnp.maximum(s3, 0.0) + b3_ref[...], 0.0)       # (96, TB)

    # conv4 (1x1) + relu
    h4 = jnp.maximum(
        jnp.dot(w4_ref[...], h3, preferred_element_type=f32) + b4_ref[...],
        0.0)                                                        # (32, TB)
    # conv5 (1x1) + relu
    h5 = jnp.maximum(
        jnp.dot(w5_ref[...], h4, preferred_element_type=f32) + b5_ref[...],
        0.0)                                                        # (D, TB)
    # conv6 (1x1), no activation — 1-row matmul with N=TB, lane-dense store.
    out_ref[...] = (
        jnp.dot(w6_ref[...], h5, preferred_element_type=f32) + b6_ref[...])


def pack_params(p):
    """One-time repack of PyTorch-shaped params into channels-major matmul form."""
    def cat_taps(w):  # (O, I, 3) -> (3*O, I): taps stacked along the output rows
        return jnp.concatenate([w[:, :, 0], w[:, :, 1], w[:, :, 2]], axis=0)
    return {
        'w1': p['w1'][:, :, 0], 'b1': p['b1'][:, None],
        'w2': cat_taps(p['w2']), 'b2': p['b2'][:, None],
        'w3': cat_taps(p['w3']), 'b3': p['b3'][:, None],
        'w4': p['w4'][:, :, 0], 'b4': p['b4'][:, None],
        'w5': p['w5'][:, :, 0], 'b5': p['b5'][:, None],
        'w6': p['w6'][:, :, 0], 'b6': p['b6'][:, None],
    }


def _round_up(n, m):
    return ((n + m - 1) // m) * m


def neuralnet_forward(x, packed, *, block_b=1024):
    """x: (B, D) float32. packed: pack_params(...) output. Returns (B,) float32."""
    B, D = x.shape
    # Batch tile on the lane axis: multiple of 128, capped by block_b.
    tb = min(_round_up(block_b, 128), _round_up(B, 128))
    b_pad = _round_up(B, tb)

    xt = x.T                                                        # (D, B)
    if b_pad != B:
        xt = jnp.pad(xt, ((0, 0), (0, b_pad - B)))

    weight_args = (packed['w1'], packed['b1'], packed['w2'], packed['b2'],
                   packed['w3'], packed['b3'], packed['w4'], packed['b4'],
                   packed['w5'], packed['b5'], packed['w6'], packed['b6'])
    # Weights/biases: full-extent blocks, constant index_map -> stay resident.
    w_specs = [pl.BlockSpec(w.shape, lambda i: (0, 0)) for w in weight_args]

    out = pl.pallas_call(
        neuralnet_kernel,
        out_shape=jax.ShapeDtypeStruct((1, b_pad), jnp.float32),
        grid=(b_pad // tb,),
        in_specs=[pl.BlockSpec((D, tb), lambda i: (0, i))] + w_specs,
        out_specs=pl.BlockSpec((1, tb), lambda i: (0, i)),
        compiler_params=pltpu.CompilerParams(
            dimension_semantics=("parallel",)),
    )(xt, *weight_args)
    return out[0, :B]


def ref_forward(x, p):
    """Pure-JAX reference mirroring the PyTorch forward literally."""
    relu = lambda a: jnp.maximum(a, 0.0)

    def conv1d(inp, w, b, pad):
        out = jax.lax.conv_general_dilated(
            inp, w, window_strides=(1,), padding=[(pad, pad)],
            dimension_numbers=('NCH', 'OIH', 'NCH'))
        return out + b[None, :, None]

    def maxpool(inp, k, pad):
        return jax.lax.reduce_window(
            inp, -jnp.inf, jax.lax.max,
            window_dimensions=(1, 1, k), window_strides=(1, 1, k),
            padding=[(0, 0), (0, 0), (pad, pad)])

    h = x[:, :, None]                       # (B, D, 1)  NCW
    h = relu(conv1d(h, p['w1'], p['b1'], 0))
    h = relu(conv1d(h, p['w2'], p['b2'], 3))
    h = relu(maxpool(h, 7, 3))
    h = relu(conv1d(h, p['w3'], p['b3'], 3))
    h = relu(maxpool(h, 7, 3))
    h = relu(conv1d(h, p['w4'], p['b4'], 0))
    h = relu(conv1d(h, p['w5'], p['b5'], 0))
    h = conv1d(h, p['w6'], p['b6'], 0)
    return jnp.squeeze(h)


def init_params(key, input_size):
    D = input_size
    shapes = {
        'w1': (32, D, 1),  'b1': (32,),
        'w2': (96, 32, 3), 'b2': (96,),
        'w3': (96, 96, 3), 'b3': (96,),
        'w4': (32, 96, 1), 'b4': (32,),
        'w5': (D, 32, 1),  'b5': (D,),
        'w6': (1, D, 1),   'b6': (1,),
    }
    params = {}
    keys = jax.random.split(key, len(shapes))
    for k, (name, shp) in zip(keys, sorted(shapes.items())):
        params[name] = (0.1 * jax.random.normal(k, shp)).astype(jnp.float32)
    return params
    # TODO(synk): fc1..fc4 + sigmoid exist in __init__ but are never used in
    # forward(), so they are intentionally not materialized.


if __name__ == "__main__":
    key = jax.random.PRNGKey(0)
    k_param, k_x = jax.random.split(key)

    input_size = 16   # D
    batch = 300       # B (non-multiple of 128 to exercise padding + 3-step grid)
    params = init_params(k_param, input_size)
    packed = pack_params(params)
    x = jax.random.normal(k_x, (batch, input_size), dtype=jnp.float32)

    out = jax.block_until_ready(neuralnet_forward(x, packed, block_b=128))
    ref = jax.block_until_ready(ref_forward(x, params))

    assert out.shape == (batch,), out.shape
    assert jnp.allclose(out, ref, rtol=1e-5, atol=1e-5), (out, ref)
    print("KERNEL_OK")
</pallas_src>

<mosaic_0001>
module attributes {stable_mosaic.version = 11 : i64} {
  func.func @neuralnet_kernel(%arg0: i32, %arg1: memref<16x128xf32, #tpu.memory_space<vmem>>, %arg2: memref<32x16xf32, #tpu.memory_space<vmem>>, %arg3: memref<32x1xf32, #tpu.memory_space<vmem>>, %arg4: memref<288x32xf32, #tpu.memory_space<vmem>>, %arg5: memref<96x1xf32, #tpu.memory_space<vmem>>, %arg6: memref<288x96xf32, #tpu.memory_space<vmem>>, %arg7: memref<96x1xf32, #tpu.memory_space<vmem>>, %arg8: memref<32x96xf32, #tpu.memory_space<vmem>>, %arg9: memref<32x1xf32, #tpu.memory_space<vmem>>, %arg10: memref<16x32xf32, #tpu.memory_space<vmem>>, %arg11: memref<16x1xf32, #tpu.memory_space<vmem>>, %arg12: memref<1x16xf32, #tpu.memory_space<vmem>>, %arg13: memref<1x1xf32, #tpu.memory_space<vmem>>, %arg14: memref<1x128xf32, #tpu.memory_space<vmem>>) attributes {dimension_semantics = [#tpu.dimension_semantics<parallel>], iteration_bounds = array<i64: 3>, scalar_prefetch = 0 : i64, scratch_operands = 0 : i64, tpu.core_type = #tpu.core_type<tc>, window_params = [{transform_indices = @transform_0, window_bounds = array<i64: 16, 128>}, {pipeline_mode = #tpu.pipeline_mode<synchronous>, transform_indices = @transform_1, window_bounds = array<i64: 32, 16>}, {pipeline_mode = #tpu.pipeline_mode<synchronous>, transform_indices = @transform_2, window_bounds = array<i64: 32, 1>}, {pipeline_mode = #tpu.pipeline_mode<synchronous>, transform_indices = @transform_3, window_bounds = array<i64: 288, 32>}, {pipeline_mode = #tpu.pipeline_mode<synchronous>, transform_indices = @transform_4, window_bounds = array<i64: 96, 1>}, {pipeline_mode = #tpu.pipeline_mode<synchronous>, transform_indices = @transform_5, window_bounds = array<i64: 288, 96>}, {pipeline_mode = #tpu.pipeline_mode<synchronous>, transform_indices = @transform_6, window_bounds = array<i64: 96, 1>}, {pipeline_mode = #tpu.pipeline_mode<synchronous>, transform_indices = @transform_7, window_bounds = array<i64: 32, 96>}, {pipeline_mode = #tpu.pipeline_mode<synchronous>, transform_indices = @transform_8, window_bounds = array<i64: 32, 1>}, {pipeline_mode = #tpu.pipeline_mode<synchronous>, transform_indices = @transform_9, window_bounds = array<i64: 16, 32>}, {pipeline_mode = #tpu.pipeline_mode<synchronous>, transform_indices = @transform_10, window_bounds = array<i64: 16, 1>}, {pipeline_mode = #tpu.pipeline_mode<synchronous>, transform_indices = @transform_11, window_bounds = array<i64: 1, 16>}, {pipeline_mode = #tpu.pipeline_mode<synchronous>, transform_indices = @transform_12, window_bounds = array<i64: 1, 1>}, {transform_indices = @transform_13, window_bounds = array<i64: 1, 128>}]} {
    %c0 = arith.constant 0 : index
    %c0_0 = arith.constant 0 : index
    %0 = vector.load %arg1[%c0, %c0_0] : memref<16x128xf32, #tpu.memory_space<vmem>>, vector<16x128xf32>
    %c0_1 = arith.constant 0 : index
    %c0_2 = arith.constant 0 : index
    %1 = vector.load %arg2[%c0_1, %c0_2] : memref<32x16xf32, #tpu.memory_space<vmem>>, vector<32x16xf32>
    %cst = arith.constant dense<0.000000e+00> : vector<32x128xf32>
    %2 = tpu.matmul %1, %0, %cst {dimension_numbers = #tpu.dot_dimension_numbers<[1], [0], [0], [1], [0, 0, 1, 1], [], []>} : vector<32x16xf32>, vector<16x128xf32>, vector<32x128xf32> -> vector<32x128xf32>
    %c0_3 = arith.constant 0 : index
    %c0_4 = arith.constant 0 : index
    %3 = vector.load %arg3[%c0_3, %c0_4] : memref<32x1xf32, #tpu.memory_space<vmem>>, vector<32x1xf32>
    %4 = vector.broadcast %3 : vector<32x1xf32> to vector<32x128xf32>
    %5 = arith.addf %2, %4 : vector<32x128xf32>
    %cst_5 = arith.constant 0.000000e+00 : f32
    %6 = vector.broadcast %cst_5 : f32 to vector<32x128xf32>
    %7 = arith.maximumf %5, %6 : vector<32x128xf32>
    %c0_6 = arith.constant 0 : index
    %c0_7 = arith.constant 0 : index
    %8 = vector.load %arg4[%c0_6, %c0_7] : memref<288x32xf32, #tpu.memory_space<vmem>>, vector<288x32xf32>
    %cst_8 = arith.constant dense<0.000000e+00> : vector<288x128xf32>
    %9 = tpu.matmul %8, %7, %cst_8 {dimension_numbers = #tpu.dot_dimension_numbers<[1], [0], [0], [1], [0, 0, 1, 1], [], []>} : vector<288x32xf32>, vector<32x128xf32>, vector<288x128xf32> -> vector<288x128xf32>
    %10 = vector.extract_strided_slice %9 {offsets = [0, 0], sizes = [96, 128], strides = [1, 1]} : vector<288x128xf32> to vector<96x128xf32>
    %11 = vector.extract_strided_slice %9 {offsets = [96, 0], sizes = [96, 128], strides = [1, 1]} : vector<288x128xf32> to vector<96x128xf32>
    %12 = arith.maximumf %10, %11 : vector<96x128xf32>
    %13 = vector.extract_strided_slice %9 {offsets = [192, 0], sizes = [96, 128], strides = [1, 1]} : vector<288x128xf32> to vector<96x128xf32>
    %14 = arith.maximumf %12, %13 : vector<96x128xf32>
    %cst_9 = arith.constant 0.000000e+00 : f32
    %15 = vector.broadcast %cst_9 : f32 to vector<96x128xf32>
    %16 = arith.maximumf %14, %15 : vector<96x128xf32>
    %c0_10 = arith.constant 0 : index
    %c0_11 = arith.constant 0 : index
    %17 = vector.load %arg5[%c0_10, %c0_11] : memref<96x1xf32, #tpu.memory_space<vmem>>, vector<96x1xf32>
    %18 = vector.broadcast %17 : vector<96x1xf32> to vector<96x128xf32>
    %19 = arith.addf %16, %18 : vector<96x128xf32>
    %cst_12 = arith.constant 0.000000e+00 : f32
    %20 = vector.broadcast %cst_12 : f32 to vector<96x128xf32>
    %21 = arith.maximumf %19, %20 : vector<96x128xf32>
    %c0_13 = arith.constant 0 : index
    %c0_14 = arith.constant 0 : index
    %22 = vector.load %arg6[%c0_13, %c0_14] : memref<288x96xf32, #tpu.memory_space<vmem>>, vector<288x96xf32>
    %cst_15 = arith.constant dense<0.000000e+00> : vector<288x128xf32>
    %23 = tpu.matmul %22, %21, %cst_15 {dimension_numbers = #tpu.dot_dimension_numbers<[1], [0], [0], [1], [0, 0, 1, 1], [], []>} : vector<288x96xf32>, vector<96x128xf32>, vector<288x128xf32> -> vector<288x128xf32>
    %24 = vector.extract_strided_slice %23 {offsets = [0, 0], sizes = [96, 128], strides = [1, 1]} : vector<288x128xf32> to vector<96x128xf32>
    %25 = vector.extract_strided_slice %23 {offsets = [96, 0], sizes = [96, 128], strides = [1, 1]} : vector<288x128xf32> to vector<96x128xf32>
    %26 = arith.maximumf %24, %25 : vector<96x128xf32>
    %27 = vector.extract_strided_slice %23 {offsets = [192, 0], sizes = [96, 128], strides = [1, 1]} : vector<288x128xf32> to vector<96x128xf32>
    %28 = arith.maximumf %26, %27 : vector<96x128xf32>
    %cst_16 = arith.constant 0.000000e+00 : f32
    %29 = vector.broadcast %cst_16 : f32 to vector<96x128xf32>
    %30 = arith.maximumf %28, %29 : vector<96x128xf32>
    %c0_17 = arith.constant 0 : index
    %c0_18 = arith.constant 0 : index
    %31 = vector.load %arg7[%c0_17, %c0_18] : memref<96x1xf32, #tpu.memory_space<vmem>>, vector<96x1xf32>
    %32 = vector.broadcast %31 : vector<96x1xf32> to vector<96x128xf32>
    %33 = arith.addf %30, %32 : vector<96x128xf32>
    %cst_19 = arith.constant 0.000000e+00 : f32
    %34 = vector.broadcast %cst_19 : f32 to vector<96x128xf32>
    %35 = arith.maximumf %33, %34 : vector<96x128xf32>
    %c0_20 = arith.constant 0 : index
    %c0_21 = arith.constant 0 : index
    %36 = vector.load %arg8[%c0_20, %c0_21] : memref<32x96xf32, #tpu.memory_space<vmem>>, vector<32x96xf32>
    %cst_22 = arith.constant dense<0.000000e+00> : vector<32x128xf32>
    %37 = tpu.matmul %36, %35, %cst_22 {dimension_numbers = #tpu.dot_dimension_numbers<[1], [0], [0], [1], [0, 0, 1, 1], [], []>} : vector<32x96xf32>, vector<96x128xf32>, vector<32x128xf32> -> vector<32x128xf32>
    %c0_23 = arith.constant 0 : index
    %c0_24 = arith.constant 0 : index
    %38 = vector.load %arg9[%c0_23, %c0_24] : memref<32x1xf32, #tpu.memory_space<vmem>>, vector<32x1xf32>
    %39 = vector.broadcast %38 : vector<32x1xf32> to vector<32x128xf32>
    %40 = arith.addf %37, %39 : vector<32x128xf32>
    %cst_25 = arith.constant 0.000000e+00 : f32
    %41 = vector.broadcast %cst_25 : f32 to vector<32x128xf32>
    %42 = arith.maximumf %40, %41 : vector<32x128xf32>
    %c0_26 = arith.constant 0 : index
    %c0_27 = arith.constant 0 : index
    %43 = vector.load %arg10[%c0_26, %c0_27] : memref<16x32xf32, #tpu.memory_space<vmem>>, vector<16x32xf32>
    %cst_28 = arith.constant dense<0.000000e+00> : vector<16x128xf32>
    %44 = tpu.matmul %43, %42, %cst_28 {dimension_numbers = #tpu.dot_dimension_numbers<[1], [0], [0], [1], [0, 0, 1, 1], [], []>} : vector<16x32xf32>, vector<32x128xf32>, vector<16x128xf32> -> vector<16x128xf32>
    %c0_29 = arith.constant 0 : index
    %c0_30 = arith.constant 0 : index
    %45 = vector.load %arg11[%c0_29, %c0_30] : memref<16x1xf32, #tpu.memory_space<vmem>>, vector<16x1xf32>
    %46 = vector.broadcast %45 : vector<16x1xf32> to vector<16x128xf32>
    %47 = arith.addf %44, %46 : vector<16x128xf32>
    %cst_31 = arith.constant 0.000000e+00 : f32
    %48 = vector.broadcast %cst_31 : f32 to vector<16x128xf32>
    %49 = arith.maximumf %47, %48 : vector<16x128xf32>
    %c0_32 = arith.constant 0 : index
    %c0_33 = arith.constant 0 : index
    %50 = vector.load %arg12[%c0_32, %c0_33] : memref<1x16xf32, #tpu.memory_space<vmem>>, vector<1x16xf32>
    %cst_34 = arith.constant dense<0.000000e+00> : vector<1x128xf32>
    %51 = tpu.matmul %50, %49, %cst_34 {dimension_numbers = #tpu.dot_dimension_numbers<[1], [0], [0], [1], [0, 0, 1, 1], [], []>} : vector<1x16xf32>, vector<16x128xf32>, vector<1x128xf32> -> vector<1x128xf32>
    %c0_35 = arith.constant 0 : index
    %c0_36 = arith.constant 0 : index
    %52 = vector.load %arg13[%c0_35, %c0_36] : memref<1x1xf32, #tpu.memory_space<vmem>>, vector<1x1xf32>
    %53 = vector.broadcast %52 : vector<1x1xf32> to vector<1x128xf32>
    %54 = arith.addf %51, %53 : vector<1x128xf32>
    %c0_37 = arith.constant 0 : index
    %c0_38 = arith.constant 0 : index
    %55 = vector.load %arg14[%c0_37, %c0_38] : memref<1x128xf32, #tpu.memory_space<vmem>>, vector<1x128xf32>
    tpu.vector_store %arg14[%c0_37, %c0_38], %54 {strides = array<i32>} : memref<1x128xf32, #tpu.memory_space<vmem>>, vector<1x128xf32>,
    return
  }
  func.func @transform_0(%arg0: i32) -> (i32, i32) {
    %c0_i32 = arith.constant 0 : i32
    %c0_i32_0 = arith.constant 0 : i32
    return %c0_i32, %arg0 : i32, i32
  }
  func.func @transform_1(%arg0: i32) -> (i32, i32) {
    %c0_i32 = arith.constant 0 : i32
    %c0_i32_0 = arith.constant 0 : i32
    %c0_i32_1 = arith.constant 0 : i32
    return %c0_i32, %c0_i32_0 : i32, i32
  }
  func.func @transform_2(%arg0: i32) -> (i32, i32) {
    %c0_i32 = arith.constant 0 : i32
    %c0_i32_0 = arith.constant 0 : i32
    %c0_i32_1 = arith.constant 0 : i32
    return %c0_i32, %c0_i32_0 : i32, i32
  }
  func.func @transform_3(%arg0: i32) -> (i32, i32) {
    %c0_i32 = arith.constant 0 : i32
    %c0_i32_0 = arith.constant 0 : i32
    %c0_i32_1 = arith.constant 0 : i32
    return %c0_i32, %c0_i32_0 : i32, i32
  }
  func.func @transform_4(%arg0: i32) -> (i32, i32) {
    %c0_i32 = arith.constant 0 : i32
    %c0_i32_0 = arith.constant 0 : i32
    %c0_i32_1 = arith.constant 0 : i32
    return %c0_i32, %c0_i32_0 : i32, i32
  }
  func.func @transform_5(%arg0: i32) -> (i32, i32) {
    %c0_i32 = arith.constant 0 : i32
    %c0_i32_0 = arith.constant 0 : i32
    %c0_i32_1 = arith.constant 0 : i32
    return %c0_i32, %c0_i32_0 : i32, i32
  }
  func.func @transform_6(%arg0: i32) -> (i32, i32) {
    %c0_i32 = arith.constant 0 : i32
    %c0_i32_0 = arith.constant 0 : i32
    %c0_i32_1 = arith.constant 0 : i32
    return %c0_i32, %c0_i32_0 : i32, i32
  }
  func.func @transform_7(%arg0: i32) -> (i32, i32) {
    %c0_i32 = arith.constant 0 : i32
    %c0_i32_0 = arith.constant 0 : i32
    %c0_i32_1 = arith.constant 0 : i32
    return %c0_i32, %c0_i32_0 : i32, i32
  }
  func.func @transform_8(%arg0: i32) -> (i32, i32) {
    %c0_i32 = arith.constant 0 : i32
    %c0_i32_0 = arith.constant 0 : i32
    %c0_i32_1 = arith.constant 0 : i32
    return %c0_i32, %c0_i32_0 : i32, i32
  }
  func.func @transform_9(%arg0: i32) -> (i32, i32) {
    %c0_i32 = arith.constant 0 : i32
    %c0_i32_0 = arith.constant 0 : i32
    %c0_i32_1 = arith.constant 0 : i32
    return %c0_i32, %c0_i32_0 : i32, i32
  }
  func.func @transform_10(%arg0: i32) -> (i32, i32) {
    %c0_i32 = arith.constant 0 : i32
    %c0_i32_0 = arith.constant 0 : i32
    %c0_i32_1 = arith.constant 0 : i32
    return %c0_i32, %c0_i32_0 : i32, i32
  }
  func.func @transform_11(%arg0: i32) -> (i32, i32) {
    %c0_i32 = arith.constant 0 : i32
    %c0_i32_0 = arith.constant 0 : i32
    %c0_i32_1 = arith.constant 0 : i32
    return %c0_i32, %c0_i32_0 : i32, i32
  }
  func.func @transform_12(%arg0: i32) -> (i32, i32) {
    %c0_i32 = arith.constant 0 : i32
    %c0_i32_0 = arith.constant 0 : i32
    %c0_i32_1 = arith.constant 0 : i32
    return %c0_i32, %c0_i32_0 : i32, i32
  }
  func.func @transform_13(%arg0: i32) -> (i32, i32) {
    %c0_i32 = arith.constant 0 : i32
    %c0_i32_0 = arith.constant 0 : i32
    return %c0_i32, %arg0 : i32, i32
  }
}

</mosaic_0001>

<llo_original>
// kernel: tpu_custom_call.1
$region0: #{tpu_custom_call.1}
  #allocation0 [shape = 'u32[]', space=smem, size = 0x4, offset = 0x4, fixed_abs, tag = 'smem constant byte address 0x4 - core index']
  #allocation1 [shape = 'u32[144,128]{1,0:T(1,128)}', space=vmem, size = 0x12000, scoped, tag = 'internal scratch']
  #allocation2 [shape = 'f32[1,1]{1,0:T(1,128)S(1)}', space=vmem, size = 0x200, scoped, tag = 'scoped memory for tpu_custom_call.1']
  %s0 = inlined_call_operand.vmem [shape: f32[16,384], index: 0, kind: input, shape index: {}]
  %s1 = inlined_call_operand.vmem [shape: f32[32,16], index: 1, kind: input, shape index: {}]
  %s2 = inlined_call_operand.vmem [shape: f32[32,1], index: 2, kind: input, shape index: {}]
  %s3 = inlined_call_operand.vmem [shape: f32[288,32], index: 3, kind: input, shape index: {}]
  %s4 = inlined_call_operand.vmem [shape: f32[96,1], index: 4, kind: input, shape index: {}]
  %s5 = inlined_call_operand.vmem [shape: f32[288,96], index: 5, kind: input, shape index: {}]
  %s6 = inlined_call_operand.vmem [shape: f32[96,1], index: 6, kind: input, shape index: {}]
  %s7 = inlined_call_operand.vmem [shape: f32[32,96], index: 7, kind: input, shape index: {}]
  %s8 = inlined_call_operand.vmem [shape: f32[32,1], index: 8, kind: input, shape index: {}]
  %s9 = inlined_call_operand.vmem [shape: f32[16,32], index: 9, kind: input, shape index: {}]
  %s10 = inlined_call_operand.vmem [shape: f32[16,1], index: 10, kind: input, shape index: {}]
  %s11 = inlined_call_operand.vmem [shape: f32[1,16], index: 11, kind: input, shape index: {}]
  %s12 = inlined_call_operand.<no memory space> [shape: f32[1,1], index: 12, kind: input, shape index: {}]
  %s13 = inlined_call_operand.hbm [shape: f32[1,384], index: 13, kind: output, shape index: {}]
  %s14 = sld [smem:[#allocation0]]
  $region123: #{tpu_custom_call.1} parent=0
    _
  %s16 = ssub.s32 1, %s14
  %s17 = scalar_select 0, %s16, %s14
  %v18 = vstv %s12
  %19 = vst [vmem:[#allocation2] sm:$0x1] %v18
  $region1: #{tpu_custom_call.1} parent=0
    #allocation3 [shape = 'u8[16384]{0}', space=vmem, size = 0x4000, scoped, tag = 'input window, operand 0']
    #allocation4 [shape = 'u8[1024]{0}', space=vmem, size = 0x400, scoped, tag = 'output window, operand 0']
    #allocation5 [shape = 's32[2]{0}', space=sflag, size = 0x8, scoped, tag = 'scoped memory for tpu_custom_call.1']
    %20 = vsyncpa [#allocation5], 0
    %s21 = scalar_lea.sflag [#allocation5], 1
    %22 = vsyncpa %s21, 0
    loop: start=0, step=1, limit=5
    $region2: #{tpu_custom_call.1} parent=1 // loop_pre_header
      _
    $region3: #{tpu_custom_call.1} parent=1 // loop_header
      %s24 = sphi 0, %s28
      %p25 = scmp.ge.s32.totalorder %s24, 5
      %s34 = sphi 0, %s36
      %s37 = sphi 0, %s34
      %s38 = sphi 0, %s37
      %s54 = sphi 0, %s38
      %s58 = sphi 0, %s58
      %s60 = sphi 0, %s58
      %s61 = sphi 0, %s60
      %s75 = sphi 0, %s61
      %s79 = sphi 0, %s79
      %s81 = sphi 0, %s79
      %s82 = sphi 0, %s81
      %s96 = sphi 0, %s82
      %s100 = sphi 0, %s100
      %s102 = sphi 0, %s100
      %s103 = sphi 0, %s102
      %s117 = sphi 0, %s103
      %s121 = sphi 0, %s121
      %s123 = sphi 0, %s121
      %s124 = sphi 0, %s123
      %s138 = sphi 0, %s124
      %s142 = sphi 0, %s142
      %s144 = sphi 0, %s142
      %s145 = sphi 0, %s144
      %s159 = sphi 0, %s145
      %s163 = sphi 0, %s163
      %s165 = sphi 0, %s163
      %s166 = sphi 0, %s165
      %s180 = sphi 0, %s166
      %s184 = sphi 0, %s184
      %s186 = sphi 0, %s184
      %s187 = sphi 0, %s186
      %s201 = sphi 0, %s187
      %s205 = sphi 0, %s205
      %s207 = sphi 0, %s205
      %s208 = sphi 0, %s207
      %s222 = sphi 0, %s208
      %s226 = sphi 0, %s226
      %s228 = sphi 0, %s226
      %s229 = sphi 0, %s228
      %s243 = sphi 0, %s229
      %s247 = sphi 0, %s247
      %s249 = sphi 0, %s247
      %s250 = sphi 0, %s249
      %s264 = sphi 0, %s250
      %s268 = sphi 0, %s268
      %s270 = sphi 0, %s268
      %s271 = sphi 0, %s270
      %s285 = sphi 0, %s271
      %s289 = sphi 0, %s289
      %s291 = sphi 0, %s289
      %s292 = sphi 0, %s291
      %s306 = sphi 0, %s292
      %s312 = sphi 0, %s314
      %s315 = sphi 0, %s312
      %s316 = sphi 0, %s315
      %s332 = sphi 0, %s316
    $region4: #{tpu_custom_call.1} parent=1 // loop_header_branch
      %27 = sbr.rel (%p25) target = $region8
    $region5: #{tpu_custom_call.1} parent=1 // loop_body
      %s29 = ssub.s32 %s24, 1
      %s30 = ssub.s32 %s24, 2
      %s31 = sadd.s32 %s24, 1
      %s32 = ssub.s32 %s24, %s31
      %p33 = scmp.eq.s32.totalorder %s32, 0
      %s35 = sadd.s32 %s34, 1
      %s36 = scalar_select %p33, %s34, %s35
      %p39 = pneg %p33
      %p40 = scmp.eq.s32.totalorder %s24, 2
      %p41 = por %p39, %p40
      %p42 = scmp.ne.s32.totalorder %s34, %s37
      %p43 = scmp.eq.s32.totalorder %s24, 0
      %p44 = por %p42, %p43
      %p45 = scmp.ne.s32.totalorder %s34, %s37
      %p46 = scmp.eq.s32.totalorder %s29, 2
      %p47 = por %p45, %p46
      %p48 = scmp.ne.s32.totalorder %s37, %s38
      %p49 = scmp.eq.s32.totalorder %s29, 0
      %p50 = por %p48, %p49
      %p51 = scmp.ne.s32.totalorder %s37, %s38
      %p52 = scmp.eq.s32.totalorder %s30, 2
      %p53 = por %p51, %p52
      %p55 = scmp.ne.s32.totalorder %s38, %s54
      %p56 = scmp.eq.s32.totalorder %s30, 0
      %p57 = por %p55, %p56
      %s59 = sadd.s32 %s58, 1
      %p62 = scmp.eq.s32.totalorder %s24, 2
      %p63 = scmp.ne.s32.totalorder %s58, %s60
      %p64 = scmp.eq.s32.totalorder %s24, 0
      %p65 = por %p63, %p64
      %p66 = scmp.ne.s32.totalorder %s58, %s60
      %p67 = scmp.eq.s32.totalorder %s29, 2
      %p68 = por %p66, %p67
      %p69 = scmp.ne.s32.totalorder %s60, %s61
      %p70 = scmp.eq.s32.totalorder %s29, 0
      %p71 = por %p69, %p70
      %p72 = scmp.ne.s32.totalorder %s60, %s61
      %p73 = scmp.eq.s32.totalorder %s30, 2
      %p74 = por %p72, %p73
      %p76 = scmp.ne.s32.totalorder %s61, %s75
      %p77 = scmp.eq.s32.totalorder %s30, 0
      %p78 = por %p76, %p77
      %s80 = sadd.s32 %s79, 1
      %p83 = scmp.eq.s32.totalorder %s24, 2
      %p84 = scmp.ne.s32.totalorder %s79, %s81
      %p85 = scmp.eq.s32.totalorder %s24, 0
      %p86 = por %p84, %p85
      %p87 = scmp.ne.s32.totalorder %s79, %s81
      %p88 = scmp.eq.s32.totalorder %s29, 2
      %p89 = por %p87, %p88
      %p90 = scmp.ne.s32.totalorder %s81, %s82
      %p91 = scmp.eq.s32.totalorder %s29, 0
      %p92 = por %p90, %p91
      %p93 = scmp.ne.s32.totalorder %s81, %s82
      %p94 = scmp.eq.s32.totalorder %s30, 2
      %p95 = por %p93, %p94
      %p97 = scmp.ne.s32.totalorder %s82, %s96
      %p98 = scmp.eq.s32.totalorder %s30, 0
      %p99 = por %p97, %p98
      %s101 = sadd.s32 %s100, 1
      %p104 = scmp.eq.s32.totalorder %s24, 2
      %p105 = scmp.ne.s32.totalorder %s100, %s102
      %p106 = scmp.eq.s32.totalorder %s24, 0
      %p107 = por %p105, %p106
      %p108 = scmp.ne.s32.totalorder %s100, %s102
      %p109 = scmp.eq.s32.totalorder %s29, 2
      %p110 = por %p108, %p109
      %p111 = scmp.ne.s32.totalorder %s102, %s103
      %p112 = scmp.eq.s32.totalorder %s29, 0
      %p113 = por %p111, %p112
      %p114 = scmp.ne.s32.totalorder %s102, %s103
      %p115 = scmp.eq.s32.totalorder %s30, 2
      %p116 = por %p114, %p115
      %p118 = scmp.ne.s32.totalorder %s103, %s117
      %p119 = scmp.eq.s32.totalorder %s30, 0
      %p120 = por %p118, %p119
      %s122 = sadd.s32 %s121, 1
      %p125 = scmp.eq.s32.totalorder %s24, 2
      %p126 = scmp.ne.s32.totalorder %s121, %s123
      %p127 = scmp.eq.s32.totalorder %s24, 0
      %p128 = por %p126, %p127
      %p129 = scmp.ne.s32.totalorder %s121, %s123
      %p130 = scmp.eq.s32.totalorder %s29, 2
      %p131 = por %p129, %p130
      %p132 = scmp.ne.s32.totalorder %s123, %s124
      %p133 = scmp.eq.s32.totalorder %s29, 0
      %p134 = por %p132, %p133
      %p135 = scmp.ne.s32.totalorder %s123, %s124
      %p136 = scmp.eq.s32.totalorder %s30, 2
      %p137 = por %p135, %p136
      %p139 = scmp.ne.s32.totalorder %s124, %s138
      %p140 = scmp.eq.s32.totalorder %s30, 0
      %p141 = por %p139, %p140
      %s143 = sadd.s32 %s142, 1
      %p146 = scmp.eq.s32.totalorder %s24, 2
      %p147 = scmp.ne.s32.totalorder %s142, %s144
      %p148 = scmp.eq.s32.totalorder %s24, 0
      %p149 = por %p147, %p148
      %p150 = scmp.ne.s32.totalorder %s142, %s144
      %p151 = scmp.eq.s32.totalorder %s29, 2
      %p152 = por %p150, %p151
      %p153 = scmp.ne.s32.totalorder %s144, %s145
      %p154 = scmp.eq.s32.totalorder %s29, 0
      %p155 = por %p153, %p154
      %p156 = scmp.ne.s32.totalorder %s144, %s145
      %p157 = scmp.eq.s32.totalorder %s30, 2
      %p158 = por %p156, %p157
      %p160 = scmp.ne.s32.totalorder %s145, %s159
      %p161 = scmp.eq.s32.totalorder %s30, 0
      %p162 = por %p160, %p161
      %s164 = sadd.s32 %s163, 1
      %p167 = scmp.eq.s32.totalorder %s24, 2
      %p168 = scmp.ne.s32.totalorder %s163, %s165
      %p169 = scmp.eq.s32.totalorder %s24, 0
      %p170 = por %p168, %p169
      %p171 = scmp.ne.s32.totalorder %s163, %s165
      %p172 = scmp.eq.s32.totalorder %s29, 2
      %p173 = por %p171, %p172
      %p174 = scmp.ne.s32.totalorder %s165, %s166
      %p175 = scmp.eq.s32.totalorder %s29, 0
      %p176 = por %p174, %p175
      %p177 = scmp.ne.s32.totalorder %s165, %s166
      %p178 = scmp.eq.s32.totalorder %s30, 2
      %p179 = por %p177, %p178
      %p181 = scmp.ne.s32.totalorder %s166, %s180
      %p182 = scmp.eq.s32.totalorder %s30, 0
      %p183 = por %p181, %p182
      %s185 = sadd.s32 %s184, 1
      %p188 = scmp.eq.s32.totalorder %s24, 2
      %p189 = scmp.ne.s32.totalorder %s184, %s186
      %p190 = scmp.eq.s32.totalorder %s24, 0
      %p191 = por %p189, %p190
      %p192 = scmp.ne.s32.totalorder %s184, %s186
      %p193 = scmp.eq.s32.totalorder %s29, 2
      %p194 = por %p192, %p193
      %p195 = scmp.ne.s32.totalorder %s186, %s187
      %p196 = scmp.eq.s32.totalorder %s29, 0
      %p197 = por %p195, %p196
      %p198 = scmp.ne.s32.totalorder %s186, %s187
      %p199 = scmp.eq.s32.totalorder %s30, 2
      %p200 = por %p198, %p199
      %p202 = scmp.ne.s32.totalorder %s187, %s201
      %p203 = scmp.eq.s32.totalorder %s30, 0
      %p204 = por %p202, %p203
      %s206 = sadd.s32 %s205, 1
      %p209 = scmp.eq.s32.totalorder %s24, 2
      %p210 = scmp.ne.s32.totalorder %s205, %s207
      %p211 = scmp.eq.s32.totalorder %s24, 0
      %p212 = por %p210, %p211
      %p213 = scmp.ne.s32.totalorder %s205, %s207
      %p214 = scmp.eq.s32.totalorder %s29, 2
      %p215 = por %p213, %p214
      %p216 = scmp.ne.s32.totalorder %s207, %s208
      %p217 = scmp.eq.s32.totalorder %s29, 0
      %p218 = por %p216, %p217
      %p219 = scmp.ne.s32.totalorder %s207, %s208
      %p220 = scmp.eq.s32.totalorder %s30, 2
      %p221 = por %p219, %p220
      %p223 = scmp.ne.s32.totalorder %s208, %s222
      %p224 = scmp.eq.s32.totalorder %s30, 0
      %p225 = por %p223, %p224
      %s227 = sadd.s32 %s226, 1
      %p230 = scmp.eq.s32.totalorder %s24, 2
      %p231 = scmp.ne.s32.totalorder %s226, %s228
      %p232 = scmp.eq.s32.totalorder %s24, 0
      %p233 = por %p231, %p232
      %p234 = scmp.ne.s32.totalorder %s226, %s228
      %p235 = scmp.eq.s32.totalorder %s29, 2
      %p236 = por %p234, %p235
      %p237 = scmp.ne.s32.totalorder %s228, %s229
      %p238 = scmp.eq.s32.totalorder %s29, 0
      %p239 = por %p237, %p238
      %p240 = scmp.ne.s32.totalorder %s228, %s229
      %p241 = scmp.eq.s32.totalorder %s30, 2
      %p242 = por %p240, %p241
      %p244 = scmp.ne.s32.totalorder %s229, %s243
      %p245 = scmp.eq.s32.totalorder %s30, 0
      %p246 = por %p244, %p245
      %s248 = sadd.s32 %s247, 1
      %p251 = scmp.eq.s32.totalorder %s24, 2
      %p252 = scmp.ne.s32.totalorder %s247, %s249
      %p253 = scmp.eq.s32.totalorder %s24, 0
      %p254 = por %p252, %p253
      %p255 = scmp.ne.s32.totalorder %s247, %s249
      %p256 = scmp.eq.s32.totalorder %s29, 2
      %p257 = por %p255, %p256
      %p258 = scmp.ne.s32.totalorder %s249, %s250
      %p259 = scmp.eq.s32.totalorder %s29, 0
      %p260 = por %p258, %p259
      %p261 = scmp.ne.s32.totalorder %s249, %s250
      %p262 = scmp.eq.s32.totalorder %s30, 2
      %p263 = por %p261, %p262
      %p265 = scmp.ne.s32.totalorder %s250, %s264
      %p266 = scmp.eq.s32.totalorder %s30, 0
      %p267 = por %p265, %p266
      %s269 = sadd.s32 %s268, 1
      %p272 = scmp.eq.s32.totalorder %s24, 2
      %p273 = scmp.ne.s32.totalorder %s268, %s270
      %p274 = scmp.eq.s32.totalorder %s24, 0
      %p275 = por %p273, %p274
      %p276 = scmp.ne.s32.totalorder %s268, %s270
      %p277 = scmp.eq.s32.totalorder %s29, 2
      %p278 = por %p276, %p277
      %p279 = scmp.ne.s32.totalorder %s270, %s271
      %p280 = scmp.eq.s32.totalorder %s29, 0
      %p281 = por %p279, %p280
      %p282 = scmp.ne.s32.totalorder %s270, %s271
      %p283 = scmp.eq.s32.totalorder %s30, 2
      %p284 = por %p282, %p283
      %p286 = scmp.ne.s32.totalorder %s271, %s285
      %p287 = scmp.eq.s32.totalorder %s30, 0
      %p288 = por %p286, %p287
      %s290 = sadd.s32 %s289, 1
      %p293 = scmp.eq.s32.totalorder %s24, 2
      %p294 = scmp.ne.s32.totalorder %s289, %s291
      %p295 = scmp.eq.s32.totalorder %s24, 0
      %p296 = por %p294, %p295
      %p297 = scmp.ne.s32.totalorder %s289, %s291
      %p298 = scmp.eq.s32.totalorder %s29, 2
      %p299 = por %p297, %p298
      %p300 = scmp.ne.s32.totalorder %s291, %s292
      %p301 = scmp.eq.s32.totalorder %s29, 0
      %p302 = por %p300, %p301
      %p303 = scmp.ne.s32.totalorder %s291, %s292
      %p304 = scmp.eq.s32.totalorder %s30, 2
      %p305 = por %p303, %p304
      %p307 = scmp.ne.s32.totalorder %s292, %s306
      %p308 = scmp.eq.s32.totalorder %s30, 0
      %p309 = por %p307, %p308
      %s310 = ssub.s32 %s24, %s31
      %p311 = scmp.eq.s32.totalorder %s310, 0
      %s313 = sadd.s32 %s312, 1
      %s314 = scalar_select %p311, %s312, %s313
      %p317 = pneg %p311
      %p318 = scmp.eq.s32.totalorder %s24, 2
      %p319 = por %p317, %p318
      %p320 = scmp.ne.s32.totalorder %s312, %s315
      %p321 = scmp.eq.s32.totalorder %s24, 0
      %p322 = por %p320, %p321
      %p323 = scmp.ne.s32.totalorder %s312, %s315
      %p324 = scmp.eq.s32.totalorder %s29, 2
      %p325 = por %p323, %p324
      %p326 = scmp.ne.s32.totalorder %s315, %s316
      %p327 = scmp.eq.s32.totalorder %s29, 0
      %p328 = por %p326, %p327
      %p329 = scmp.ne.s32.totalorder %s315, %s316
      %p330 = scmp.eq.s32.totalorder %s30, 2
      %p331 = por %p329, %p330
      %p333 = scmp.ne.s32.totalorder %s316, %s332
      %p334 = scmp.eq.s32.totalorder %s30, 0
      %p335 = por %p333, %p334
      %p336 = scmp.le.s32.totalorder 1, %s24
      %p337 = scmp.lt.s32.totalorder %s24, 4
      %p338 = pnand %p336, %p337
      %p339 = pneg %p338
      // Predicated region
      $region9: #{tpu_custom_call.1} parent=5 // pred_check
        _
      $region10: #{tpu_custom_call.1} parent=5 // pred_check_branch
        %341 = sbr.rel (%p338) target = $region12
      $region11: #{tpu_custom_call.1} parent=5 // pred_region
        %s342 = ssub.s32 %s24, 1
        // Predicated region
        $region13: #{tpu_custom_call.1} parent=11 // pred_check
          %p343 = pneg %p71
        $region14: #{tpu_custom_call.1} parent=11 // pred_check_branch
          %345 = sbr.rel (%p343) target = $region16
        $region15: #{tpu_custom_call.1} parent=11 // pred_region
          _
        $region16: #{tpu_custom_call.1} parent=11 // pred_fallthru
          _
        // Predicated region
        $region17: #{tpu_custom_call.1} parent=11 // pred_check
          %p346 = pneg %p92
        $region18: #{tpu_custom_call.1} parent=11 // pred_check_branch
          %348 = sbr.rel (%p346) target = $region20
        $region19: #{tpu_custom_call.1} parent=11 // pred_region
          _
        $region20: #{tpu_custom_call.1} parent=11 // pred_fallthru
          _
        // Predicated region
        $region21: #{tpu_custom_call.1} parent=11 // pred_check
          %p349 = pneg %p113
        $region22: #{tpu_custom_call.1} parent=11 // pred_check_branch
          %351 = sbr.rel (%p349) target = $region24
        $region23: #{tpu_custom_call.1} parent=11 // pred_region
          _
        $region24: #{tpu_custom_call.1} parent=11 // pred_fallthru
          _
        // Predicated region
        $region25: #{tpu_custom_call.1} parent=11 // pred_check
          %p352 = pneg %p134
        $region26: #{tpu_custom_call.1} parent=11 // pred_check_branch
          %354 = sbr.rel (%p352) target = $region28
        $region27: #{tpu_custom_call.1} parent=11 // pred_region
          _
        $region28: #{tpu_custom_call.1} parent=11 // pred_fallthru
          _
        // Predicated region
        $region29: #{tpu_custom_call.1} parent=11 // pred_check
          %p355 = pneg %p155
        $region30: #{tpu_custom_call.1} parent=11 // pred_check_branch
          %357 = sbr.rel (%p355) target = $region32
        $region31: #{tpu_custom_call.1} parent=11 // pred_region
          _
        $region32: #{tpu_custom_call.1} parent=11 // pred_fallthru
          _
        // Predicated region
        $region33: #{tpu_custom_call.1} parent=11 // pred_check
          %p358 = pneg %p176
        $region34: #{tpu_custom_call.1} parent=11 // pred_check_branch
          %360 = sbr.rel (%p358) target = $region36
        $region35: #{tpu_custom_call.1} parent=11 // pred_region
          _
        $region36: #{tpu_custom_call.1} parent=11 // pred_fallthru
          _
        // Predicated region
        $region37: #{tpu_custom_call.1} parent=11 // pred_check
          %p361 = pneg %p197
        $region38: #{tpu_custom_call.1} parent=11 // pred_check_branch
          %363 = sbr.rel (%p361) target = $region40
        $region39: #{tpu_custom_call.1} parent=11 // pred_region
          _
        $region40: #{tpu_custom_call.1} parent=11 // pred_fallthru
          _
        // Predicated region
        $region41: #{tpu_custom_call.1} parent=11 // pred_check
          %p364 = pneg %p218
        $region42: #{tpu_custom_call.1} parent=11 // pred_check_branch
          %366 = sbr.rel (%p364) target = $region44
        $region43: #{tpu_custom_call.1} parent=11 // pred_region
          _
        $region44: #{tpu_custom_call.1} parent=11 // pred_fallthru
          _
        // Predicated region
        $region45: #{tpu_custom_call.1} parent=11 // pred_check
          %p367 = pneg %p239
        $region46: #{tpu_custom_call.1} parent=11 // pred_check_branch
          %369 = sbr.rel (%p367) target = $region48
        $region47: #{tpu_custom_call.1} parent=11 // pred_region
          _
        $region48: #{tpu_custom_call.1} parent=11 // pred_fallthru
          _
        // Predicated region
        $region49: #{tpu_custom_call.1} parent=11 // pred_check
          %p370 = pneg %p260
        $region50: #{tpu_custom_call.1} parent=11 // pred_check_branch
          %372 = sbr.rel (%p370) target = $region52
        $region51: #{tpu_custom_call.1} parent=11 // pred_region
          _
        $region52: #{tpu_custom_call.1} parent=11 // pred_fallthru
          _
        // Predicated region
        $region53: #{tpu_custom_call.1} parent=11 // pred_check
          %p373 = pneg %p281
        $region54: #{tpu_custom_call.1} parent=11 // pred_check_branch
          %375 = sbr.rel (%p373) target = $region56
        $region55: #{tpu_custom_call.1} parent=11 // pred_region
          _
        $region56: #{tpu_custom_call.1} parent=11 // pred_fallthru
          _
        // Predicated region
        $region57: #{tpu_custom_call.1} parent=11 // pred_check
          %p376 = pneg %p302
        $region58: #{tpu_custom_call.1} parent=11 // pred_check_branch
          %378 = sbr.rel (%p376) target = $region60
        $region59: #{tpu_custom_call.1} parent=11 // pred_region
          _
        $region60: #{tpu_custom_call.1} parent=11 // pred_fallthru
          _
      $region12: #{tpu_custom_call.1} parent=5 // pred_fallthru
        _
      %p379 = scmp.lt.s32.totalorder %s24, 3
      // Predicated region
      $region61: #{tpu_custom_call.1} parent=5 // pred_check
        %p380 = pneg %p379
      $region62: #{tpu_custom_call.1} parent=5 // pred_check_branch
        %382 = sbr.rel (%p380) target = $region64
      $region63: #{tpu_custom_call.1} parent=5 // pred_region
        // Predicated region
        $region65: #{tpu_custom_call.1} parent=63 // pred_check
          %p383 = pneg %p44
        $region66: #{tpu_custom_call.1} parent=63 // pred_check_branch
          %385 = sbr.rel (%p383) target = $region68
        $region67: #{tpu_custom_call.1} parent=63 // pred_region
          %s386 = sand.u32 %s34, 1
          %s387 = sand.u32 %s34, 1
          %s388 = smul.addr %s387, 16
          %s389 = scalar_lea.vmem [#allocation3], %s388
          %s390 = smul.addr %s24, 8
          %s391 = scalar_lea.vmem %s0, %s390
          // Predicated region
          $region69: #{tpu_custom_call.1} parent=67 // pred_check
            _
          $region70: #{tpu_custom_call.1} parent=67 // pred_check_branch
            %393 = sbr.rel (0) target = $region72
          $region71: #{tpu_custom_call.1} parent=67 // pred_region
            // Predicated region
            $region73: #{tpu_custom_call.1} parent=71 // pred_check
              _
            $region74: #{tpu_custom_call.1} parent=71 // pred_check_branch
              %395 = sbr.rel (0) target = $region76
            $region75: #{tpu_custom_call.1} parent=71 // pred_region
              // Predicated region
              $region88: #{tpu_custom_call.1} parent=75 // pred_check
                _
              $region89: #{tpu_custom_call.1} parent=75 // pred_check_branch
                %412 = sbr.rel (0) target = $region91
              $region90: #{tpu_custom_call.1} parent=75 // pred_region
                loop: start=0, step=1, limit=1
                $region92: #{tpu_custom_call.1} parent=90 // loop_pre_header
                  _
                $region93: #{tpu_custom_call.1} parent=90 // loop_header
                  %s414 = sphi 0, %s418
                  %p415 = scmp.ge.s32.totalorder %s414, 1
                  %s419 = sphi %s391, %s391
                  %s420 = sphi %s389, %s389
                $region94: #{tpu_custom_call.1} parent=90 // loop_header_branch
                  %417 = sbr.rel (%p415) target = $region98
                $region95: #{tpu_custom_call.1} parent=90 // loop_body
                  %v421 = vld [vmem:[%s419] sm:$0xff]
                  %422 = vst [vmem:[%s420] sm:$0xff] %v421
                  %v423 = vld [vmem:[%s419 + $0x18] sm:$0xff]
                  %424 = vst [vmem:[%s420 + $0x8] sm:$0xff] %v423
                $region96: #{tpu_custom_call.1} parent=90 // loop_footer
                  %s418 = sadd.s32 1, %s414
                $region97: #{tpu_custom_call.1} parent=90 // loop_footer_branch
                  %413 = sbr.rel target = $region93
                $region98: #{tpu_custom_call.1} parent=90 // loop_exit
                  _
              $region91: #{tpu_custom_call.1} parent=75 // pred_fallthru
                _
              // Predicated region
              $region99: #{tpu_custom_call.1} parent=75 // pred_check
                _
              $region100: #{tpu_custom_call.1} parent=75 // pred_check_branch
                %426 = sbr.rel target = $region102
              $region101: #{tpu_custom_call.1} parent=75 // pred_region
                _
              $region102: #{tpu_custom_call.1} parent=75 // pred_fallthru
                _
            $region76: #{tpu_custom_call.1} parent=71 // pred_fallthru
              _
            // Predicated region
            $region77: #{tpu_custom_call.1} parent=71 // pred_check
              _
            $region78: #{tpu_custom_call.1} parent=71 // pred_check_branch
              %397 = sbr.rel target = $region80
            $region79: #{tpu_custom_call.1} parent=71 // pred_region
              loop: start=0, step=1, limit=1
              $region81: #{tpu_custom_call.1} parent=79 // loop_pre_header
                _
              $region82: #{tpu_custom_call.1} parent=79 // loop_header
                %s400 = sphi 0, %s404
                %p401 = scmp.ge.s32.totalorder %s400, 1
                %s405 = sphi %s391, %s391
                %s406 = sphi %s389, %s389
              $region83: #{tpu_custom_call.1} parent=79 // loop_header_branch
                %403 = sbr.rel (%p401) target = $region87
              $region84: #{tpu_custom_call.1} parent=79 // loop_body
                %v407 = vld [vmem:[%s405] sm:$0xff]
                %408 = vst [vmem:[%s406] sm:$0xff] %v407
                %v409 = vld [vmem:[%s405 + $0x18] sm:$0xff]
                %410 = vst [vmem:[%s406 + $0x8] sm:$0xff] %v409
              $region85: #{tpu_custom_call.1} parent=79 // loop_footer
                %s404 = sadd.s32 1, %s400
              $region86: #{tpu_custom_call.1} parent=79 // loop_footer_branch
                %399 = sbr.rel target = $region82
              $region87: #{tpu_custom_call.1} parent=79 // loop_exit
                _
            $region80: #{tpu_custom_call.1} parent=71 // pred_fallthru
              _
          $region72: #{tpu_custom_call.1} parent=67 // pred_fallthru
            _
          %427 = vnop
        $region68: #{tpu_custom_call.1} parent=63 // pred_fallthru
          _
      $region64: #{tpu_custom_call.1} parent=5 // pred_fallthru
        _
      %p428 = scmp.le.s32.totalorder 1, %s24
      %p429 = scmp.lt.s32.totalorder %s24, 4
      %p430 = pnand %p428, %p429
      %p431 = pneg %p430
      // Predicated region
      $region103: #{tpu_custom_call.1} parent=5 // pred_check
        _
      $region104: #{tpu_custom_call.1} parent=5 // pred_check_branch
        %433 = sbr.rel (%p430) target = $region106
      $region105: #{tpu_custom_call.1} parent=5 // pred_region
        %s434 = ssub.s32 %s24, 1
        %s435 = sand.u32 %s37, 1
        %s436 = sand.u32 %s37, 1
        %s437 = smul.addr %s436, 16
        %s438 = scalar_lea.vmem [#allocation3], %s437
        // Predicated region
        $region107: #{tpu_custom_call.1} parent=105 // pred_check
          %p439 = pneg %p50
        $region108: #{tpu_custom_call.1} parent=105 // pred_check_branch
          %441 = sbr.rel (%p439) target = $region110
        $region109: #{tpu_custom_call.1} parent=105 // pred_region
          _
        $region110: #{tpu_custom_call.1} parent=105 // pred_fallthru
          _
        %s442 = sand.u32 %s37, 1
        %s443 = sand.u32 %s37, 1
        %s444 = smul.addr %s443, 16
        %s445 = scalar_lea.vmem [#allocation3], %s444
        %p446 = pneg %p50
        %p447 = pneg %p47
        %p448 = pneg %p71
        %p449 = pneg %p68
        %p450 = pneg %p92
        %p451 = pneg %p89
        %p452 = pneg %p113
        %p453 = pneg %p110
        %p454 = pneg %p134
        %p455 = pneg %p131
        %p456 = pneg %p155
        %p457 = pneg %p152
        %p458 = pneg %p176
        %p459 = pneg %p173
        %p460 = pneg %p197
        %p461 = pneg %p194
        %p462 = pneg %p218
        %p463 = pneg %p215
        %p464 = pneg %p239
        %p465 = pneg %p236
        %p466 = pneg %p260
        %p467 = pneg %p257
        %p468 = pneg %p281
        %p469 = pneg %p278
        %p470 = pneg %p302
        %p471 = pneg %p299
        %p472 = pneg %p328
        %p473 = pneg %p325
        %s474 = sand.u32 %s315, 1
        %s475 = scalar_lea.sflag [#allocation5], %s474
        %s476 = sand.u32 %s315, 1
        %s477 = scalar_lea.vmem [#allocation4], %s476
        %v478 = vld [vmem:[%s438] sm:$0xff]
        %v479 = vld [vmem:[%s438 + $0x8] sm:$0xff]
        %v480 = vld [vmem:[%s1] sm:$0xff]
        %v481 = vld [vmem:[%s1 + $0x8] sm:$0xff]
        %v482 = vld [vmem:[%s1 + $0x10] sm:$0xff]
        %v483 = vld [vmem:[%s1 + $0x18] sm:$0xff]
        %v484 = vld [vmem:[%s2] sm:$0xff]
        %v485 = vld [vmem:[%s2 + $0x8] sm:$0xff]
        %v486 = vld [vmem:[%s2 + $0x10] sm:$0xff]
        %v487 = vld [vmem:[%s2 + $0x18] sm:$0xff]
        %489 = vset.pattern.permute.xlu0 0
        %490 = vperm.xlu0 %489, %v484
        %v491 = vpop.permute.xlu0 %490
        %494 = vset.pattern.permute.xlu0 0
        %495 = vperm.xlu0 %494, %v485
        %v496 = vpop.permute.xlu0 %495
        %499 = vset.pattern.permute.xlu0 0
        %500 = vperm.xlu0 %499, %v486
        %v501 = vpop.permute.xlu0 %500
        %504 = vset.pattern.permute.xlu0 0
        %505 = vperm.xlu0 %504, %v487
        %v506 = vpop.permute.xlu0 %505
        %vm508 = vcmask 130048
        %v510 = vsel %vm508, %v480, 0
        %v513 = vsel %vm508, %v481, 0
        %v516 = vsel %vm508, %v482, 0
        %v519 = vsel %vm508, %v483, 0
        %521 = vmatprep.subr.mxu0 0.0
        %522 = vmatpush1.msra.mxu0 %v478
        %523 = vmatprep.subr.mxu0 0.0
        %524 = vmatpush1.msra.mxu0 %v479
        %525 = vmatprep.subr.mxu0 0.0
        %526 = vmatpush1.msra.mxu0 0.0
        %527 = vmatprep.subr.mxu0 0.0
        %528 = vmatpush1.msra.mxu0 0.0
        %529 = vmatprep.subr.mxu0 0.0
        %530 = vmatpush1.msra.mxu0 0.0
        %531 = vmatprep.subr.mxu0 0.0
        %532 = vmatpush1.msra.mxu0 0.0
        %533 = vmatprep.subr.mxu0 0.0
        %534 = vmatpush1.msra.mxu0 0.0
        %535 = vmatprep.subr.mxu0 0.0
        %536 = vmatpush1.msra.mxu0 0.0
        %537 = vmatprep.subr.mxu0 0.0
        %538 = vmatpush1.msra.mxu0 0.0
        %539 = vmatprep.subr.mxu0 0.0
        %540 = vmatpush1.msra.mxu0 0.0
        %541 = vmatprep.subr.mxu0 0.0
        %542 = vmatpush1.msra.mxu0 0.0
        %543 = vmatprep.subr.mxu0 0.0
        %544 = vmatpush1.msra.mxu0 0.0
        %545 = vmatprep.subr.mxu0 0.0
        %546 = vmatpush1.msra.mxu0 0.0
        %547 = vmatprep.subr.mxu0 0.0
        %548 = vmatpush1.msra.mxu0 0.0
        %549 = vmatprep.subr.mxu0 0.0
        %550 = vmatpush1.msra.mxu0 0.0
        %551 = vmatprep.subr.mxu0 0.0
        %552 = vmatpush1.msra.mxu0 0.0
        %553 = vmatprep.subr.mxu0 0.0
        %554 = vmatpush1.msra.mxu0 0.0
        %555 = vmatprep.subr.mxu0 0.0
        %556 = vmatpush1.msra.mxu0 0.0
        %557 = vmatprep.subr.mxu0 0.0
        %558 = vmatpush1.msra.mxu0 0.0
        %559 = vmatprep.subr.mxu0 0.0
        %560 = vmatpush1.msra.mxu0 0.0
        %561 = vmatprep.subr.mxu0 0.0
        %562 = vmatpush1.msra.mxu0 0.0
        %563 = vmatprep.subr.mxu0 0.0
        %564 = vmatpush1.msra.mxu0 0.0
        %565 = vmatprep.subr.mxu0 0.0
        %566 = vmatpush1.msra.mxu0 0.0
        %567 = vmatprep.subr.mxu0 0.0
        %568 = vmatpush1.msra.mxu0 0.0
        %569 = vmatprep.subr.mxu0 0.0
        %570 = vmatpush1.msra.mxu0 0.0
        %571 = vmatprep.subr.mxu0 0.0
        %572 = vmatpush1.msra.mxu0 0.0
        %573 = vmatprep.subr.mxu0 0.0
        %574 = vmatpush1.msra.mxu0 0.0
        %575 = vmatprep.subr.mxu0 0.0
        %576 = vmatpush1.msra.mxu0 0.0
        %577 = vmatprep.subr.mxu0 0.0
        %578 = vmatpush1.msra.mxu0 0.0
        %579 = vmatprep.subr.mxu0 0.0
        %580 = vmatpush1.msra.mxu0 0.0
        %581 = vmatprep.subr.mxu0 0.0
        %582 = vmatpush1.msra.mxu0 0.0
        %583 = vmatprep.subr.mxu0 0.0
        %584 = vmatpush1.msra.mxu0 0.0
        %585 = vmatprep.mubr.f32.mxu0 0.0
        %586 = vmatmul.mubr.f32.gmra.mrb[0].mxu0 %v510
        %v587 = vpop.f32.mrb[0].mxu0
        %v588 = vadd.f32 %v491, %v587
        %v589 = vpop.f32.mrb[0].mxu0
        %590 = vmatprep.mubr.f32.mxu0 0.0
        %591 = vmatmul.mubr.f32.gmra.mrb[0].mxu0 %v513
        %v592 = vpop.f32.mrb[0].mxu0
        %v593 = vadd.f32 %v496, %v592
        %v594 = vpop.f32.mrb[0].mxu0
        %595 = vmatprep.mubr.f32.mxu0 0.0
        %596 = vmatmul.mubr.f32.gmra.mrb[0].mxu0 %v516
        %v597 = vpop.f32.mrb[0].mxu0
        %v598 = vadd.f32 %v501, %v597
        %v599 = vpop.f32.mrb[0].mxu0
        %600 = vmatprep.mubr.f32.mxu0 0.0
        %601 = vmatmul.mubr.f32.gmra.mrb[0].mxu0 %v519
        %v602 = vpop.f32.mrb[0].mxu0
        %v603 = vadd.f32 %v506, %v602
        %v604 = vpop.f32.mrb[0].mxu0
        %605 = vdwg.mxu0
        %v606 = vmax.f32 %v588, 0.0
        %v607 = vmax.f32 %v593, 0.0
        %v608 = vmax.f32 %v598, 0.0
        %v609 = vmax.f32 %v603, 0.0
        %v610 = vld [vmem:[%s3] sm:$0xff]
        %v611 = vld [vmem:[%s3 + $0x8] sm:$0xff]
        %v612 = vld [vmem:[%s3 + $0x10] sm:$0xff]
        %v613 = vld [vmem:[%s3 + $0x18] sm:$0xff]
        %v614 = vld [vmem:[%s3 + $0x20] sm:$0xff]
        %v615 = vld [vmem:[%s3 + $0x28] sm:$0xff]
        %v616 = vld [vmem:[%s3 + $0x30] sm:$0xff]
        %v617 = vld [vmem:[%s3 + $0x38] sm:$0xff]
        %v618 = vld [vmem:[%s3 + $0x40] sm:$0xff]
        %v619 = vld [vmem:[%s3 + $0x48] sm:$0xff]
        %v620 = vld [vmem:[%s3 + $0x50] sm:$0xff]
        %v621 = vld [vmem:[%s3 + $0x58] sm:$0xff]
        %v622 = vld [vmem:[%s3 + $0x60] sm:$0xff]
        %v623 = vld [vmem:[%s3 + $0x68] sm:$0xff]
        %v624 = vld [vmem:[%s3 + $0x70] sm:$0xff]
        %v625 = vld [vmem:[%s3 + $0x78] sm:$0xff]
        %v626 = vld [vmem:[%s3 + $0x80] sm:$0xff]
        %v627 = vld [vmem:[%s3 + $0x88] sm:$0xff]
        %v628 = vld [vmem:[%s3 + $0x90] sm:$0xff]
        %v629 = vld [vmem:[%s3 + $0x98] sm:$0xff]
        %v630 = vld [vmem:[%s3 + $0xa0] sm:$0xff]
        %v631 = vld [vmem:[%s3 + $0xa8] sm:$0xff]
        %v632 = vld [vmem:[%s3 + $0xb0] sm:$0xff]
        %v633 = vld [vmem:[%s3 + $0xb8] sm:$0xff]
        %v634 = vld [vmem:[%s3 + $0xc0] sm:$0xff]
        %v635 = vld [vmem:[%s3 + $0xc8] sm:$0xff]
        %v636 = vld [vmem:[%s3 + $0xd0] sm:$0xff]
        %v637 = vld [vmem:[%s3 + $0xd8] sm:$0xff]
        %v638 = vld [vmem:[%s3 + $0xe0] sm:$0xff]
        %v639 = vld [vmem:[%s3 + $0xe8] sm:$0xff]
        %v640 = vld [vmem:[%s3 + $0xf0] sm:$0xff]
        %v641 = vld [vmem:[%s3 + $0xf8] sm:$0xff]
        %v642 = vld [vmem:[%s3 + $0x100] sm:$0xff]
        %v643 = vld [vmem:[%s3 + $0x108] sm:$0xff]
        %v644 = vld [vmem:[%s3 + $0x110] sm:$0xff]
        %v645 = vld [vmem:[%s3 + $0x118] sm:$0xff]
        %vm646 = vcmask 261120
        %v648 = vsel %vm646, %v610, 0
        %v651 = vsel %vm646, %v611, 0
        %v654 = vsel %vm646, %v612, 0
        %v657 = vsel %vm646, %v613, 0
        %v660 = vsel %vm646, %v614, 0
        %v663 = vsel %vm646, %v615, 0
        %v666 = vsel %vm646, %v616, 0
        %v669 = vsel %vm646, %v617, 0
        %v672 = vsel %vm646, %v618, 0
        %v675 = vsel %vm646, %v619, 0
        %v678 = vsel %vm646, %v620, 0
        %v681 = vsel %vm646, %v621, 0
        %v684 = vsel %vm646, %v622, 0
        %v687 = vsel %vm646, %v623, 0
        %v690 = vsel %vm646, %v624, 0
        %v693 = vsel %vm646, %v625, 0
        %v696 = vsel %vm646, %v626, 0
        %v699 = vsel %vm646, %v627, 0
        %v702 = vsel %vm646, %v628, 0
        %v705 = vsel %vm646, %v629, 0
        %v708 = vsel %vm646, %v630, 0
        %v711 = vsel %vm646, %v631, 0
        %v714 = vsel %vm646, %v632, 0
        %v717 = vsel %vm646, %v633, 0
        %v720 = vsel %vm646, %v634, 0
        %v723 = vsel %vm646, %v635, 0
        %v726 = vsel %vm646, %v636, 0
        %v729 = vsel %vm646, %v637, 0
        %v732 = vsel %vm646, %v638, 0
        %v735 = vsel %vm646, %v639, 0
        %v738 = vsel %vm646, %v640, 0
        %v741 = vsel %vm646, %v641, 0
        %v744 = vsel %vm646, %v642, 0
        %v747 = vsel %vm646, %v643, 0
        %v750 = vsel %vm646, %v644, 0
        %v753 = vsel %vm646, %v645, 0
        %755 = vmatprep.subr.mxu0 0.0
        %756 = vmatpush1.msra.mxu0 %v606
        %757 = vmatprep.subr.mxu0 0.0
        %758 = vmatpush1.msra.mxu0 %v607
        %759 = vmatprep.subr.mxu0 0.0
        %760 = vmatpush1.msra.mxu0 %v608
        %761 = vmatprep.subr.mxu0 0.0
        %762 = vmatpush1.msra.mxu0 %v609
        %763 = vmatprep.subr.mxu0 0.0
        %764 = vmatpush1.msra.mxu0 0.0
        %765 = vmatprep.subr.mxu0 0.0
        %766 = vmatpush1.msra.mxu0 0.0
        %767 = vmatprep.subr.mxu0 0.0
        %768 = vmatpush1.msra.mxu0 0.0
        %769 = vmatprep.subr.mxu0 0.0
        %770 = vmatpush1.msra.mxu0 0.0
        %771 = vmatprep.subr.mxu0 0.0
        %772 = vmatpush1.msra.mxu0 0.0
        %773 = vmatprep.subr.mxu0 0.0
        %774 = vmatpush1.msra.mxu0 0.0
        %775 = vmatprep.subr.mxu0 0.0
        %776 = vmatpush1.msra.mxu0 0.0
        %777 = vmatprep.subr.mxu0 0.0
        %778 = vmatpush1.msra.mxu0 0.0
        %779 = vmatprep.subr.mxu0 0.0
        %780 = vmatpush1.msra.mxu0 0.0
        %781 = vmatprep.subr.mxu0 0.0
        %782 = vmatpush1.msra.mxu0 0.0
        %783 = vmatprep.subr.mxu0 0.0
        %784 = vmatpush1.msra.mxu0 0.0
        %785 = vmatprep.subr.mxu0 0.0
        %786 = vmatpush1.msra.mxu0 0.0
        %787 = vmatprep.subr.mxu0 0.0
        %788 = vmatpush1.msra.mxu0 0.0
        %789 = vmatprep.subr.mxu0 0.0
        %790 = vmatpush1.msra.mxu0 0.0
        %791 = vmatprep.subr.mxu0 0.0
        %792 = vmatpush1.msra.mxu0 0.0
        %793 = vmatprep.subr.mxu0 0.0
        %794 = vmatpush1.msra.mxu0 0.0
        %795 = vmatprep.subr.mxu0 0.0
        %796 = vmatpush1.msra.mxu0 0.0
        %797 = vmatprep.subr.mxu0 0.0
        %798 = vmatpush1.msra.mxu0 0.0
        %799 = vmatprep.subr.mxu0 0.0
        %800 = vmatpush1.msra.mxu0 0.0
        %801 = vmatprep.subr.mxu0 0.0
        %802 = vmatpush1.msra.mxu0 0.0
        %803 = vmatprep.subr.mxu0 0.0
        %804 = vmatpush1.msra.mxu0 0.0
        %805 = vmatprep.subr.mxu0 0.0
        %806 = vmatpush1.msra.mxu0 0.0
        %807 = vmatprep.subr.mxu0 0.0
        %808 = vmatpush1.msra.mxu0 0.0
        %809 = vmatprep.subr.mxu0 0.0
        %810 = vmatpush1.msra.mxu0 0.0
        %811 = vmatprep.subr.mxu0 0.0
        %812 = vmatpush1.msra.mxu0 0.0
        %813 = vmatprep.subr.mxu0 0.0
        %814 = vmatpush1.msra.mxu0 0.0
        %815 = vmatprep.subr.mxu0 0.0
        %816 = vmatpush1.msra.mxu0 0.0
        %817 = vmatprep.subr.mxu0 0.0
        %818 = vmatpush1.msra.mxu0 0.0
        %819 = vmatprep.mubr.f32.mxu0 0.0
        %820 = vmatmul.mubr.f32.gmra.mrb[0].mxu0 %v648
        %v821 = vpop.f32.mrb[0].mxu0
        %v822 = vadd.f32 0.0, %v821
        %v823 = vpop.f32.mrb[0].mxu0
        %824 = vmatprep.mubr.f32.mxu0 0.0
        %825 = vmatmul.mubr.f32.gmra.mrb[0].mxu0 %v651
        %v826 = vpop.f32.mrb[0].mxu0
        %v827 = vadd.f32 0.0, %v826
        %v828 = vpop.f32.mrb[0].mxu0
        %829 = vmatprep.mubr.f32.mxu0 0.0
        %830 = vmatmul.mubr.f32.gmra.mrb[0].mxu0 %v654
        %v831 = vpop.f32.mrb[0].mxu0
        %v832 = vadd.f32 0.0, %v831
        %v833 = vpop.f32.mrb[0].mxu0
        %834 = vmatprep.mubr.f32.mxu0 0.0
        %835 = vmatmul.mubr.f32.gmra.mrb[0].mxu0 %v657
        %v836 = vpop.f32.mrb[0].mxu0
        %v837 = vadd.f32 0.0, %v836
        %v838 = vpop.f32.mrb[0].mxu0
        %839 = vmatprep.mubr.f32.mxu0 0.0
        %840 = vmatmul.mubr.f32.gmra.mrb[0].mxu0 %v660
        %v841 = vpop.f32.mrb[0].mxu0
        %v842 = vadd.f32 0.0, %v841
        %v843 = vpop.f32.mrb[0].mxu0
        %844 = vmatprep.mubr.f32.mxu0 0.0
        %845 = vmatmul.mubr.f32.gmra.mrb[0].mxu0 %v663
        %v846 = vpop.f32.mrb[0].mxu0
        %v847 = vadd.f32 0.0, %v846
        %v848 = vpop.f32.mrb[0].mxu0
        %849 = vmatprep.mubr.f32.mxu0 0.0
        %850 = vmatmul.mubr.f32.gmra.mrb[0].mxu0 %v666
        %v851 = vpop.f32.mrb[0].mxu0
        %v852 = vadd.f32 0.0, %v851
        %v853 = vpop.f32.mrb[0].mxu0
        %854 = vmatprep.mubr.f32.mxu0 0.0
        %855 = vmatmul.mubr.f32.gmra.mrb[0].mxu0 %v669
        %v856 = vpop.f32.mrb[0].mxu0
        %v857 = vadd.f32 0.0, %v856
        %v858 = vpop.f32.mrb[0].mxu0
        %859 = vmatprep.mubr.f32.mxu0 0.0
        %860 = vmatmul.mubr.f32.gmra.mrb[0].mxu0 %v672
        %v861 = vpop.f32.mrb[0].mxu0
        %v862 = vadd.f32 0.0, %v861
        %v863 = vpop.f32.mrb[0].mxu0
        %864 = vmatprep.mubr.f32.mxu0 0.0
        %865 = vmatmul.mubr.f32.gmra.mrb[0].mxu0 %v675
        %v866 = vpop.f32.mrb[0].mxu0
        %v867 = vadd.f32 0.0, %v866
        %v868 = vpop.f32.mrb[0].mxu0
        %869 = vmatprep.mubr.f32.mxu0 0.0
        %870 = vmatmul.mubr.f32.gmra.mrb[0].mxu0 %v678
        %v871 = vpop.f32.mrb[0].mxu0
        %v872 = vadd.f32 0.0, %v871
        %v873 = vpop.f32.mrb[0].mxu0
        %874 = vmatprep.mubr.f32.mxu0 0.0
        %875 = vmatmul.mubr.f32.gmra.mrb[0].mxu0 %v681
        %v876 = vpop.f32.mrb[0].mxu0
        %v877 = vadd.f32 0.0, %v876
        %v878 = vpop.f32.mrb[0].mxu0
        %879 = vmatprep.mubr.f32.mxu0 0.0
        %880 = vmatmul.mubr.f32.gmra.mrb[0].mxu0 %v684
        %v881 = vpop.f32.mrb[0].mxu0
        %v882 = vadd.f32 0.0, %v881
        %v883 = vpop.f32.mrb[0].mxu0
        %884 = vmatprep.mubr.f32.mxu0 0.0
        %885 = vmatmul.mubr.f32.gmra.mrb[0].mxu0 %v687
        %v886 = vpop.f32.mrb[0].mxu0
        %v887 = vadd.f32 0.0, %v886
        %v888 = vpop.f32.mrb[0].mxu0
        %889 = vmatprep.mubr.f32.mxu0 0.0
        %890 = vmatmul.mubr.f32.gmra.mrb[0].mxu0 %v690
        %v891 = vpop.f32.mrb[0].mxu0
        %v892 = vadd.f32 0.0, %v891
        %v893 = vpop.f32.mrb[0].mxu0
        %894 = vmatprep.mubr.f32.mxu0 0.0
        %895 = vmatmul.mubr.f32.gmra.mrb[0].mxu0 %v693
        %v896 = vpop.f32.mrb[0].mxu0
        %v897 = vadd.f32 0.0, %v896
        %v898 = vpop.f32.mrb[0].mxu0
        %899 = vmatprep.mubr.f32.mxu0 0.0
        %900 = vmatmul.mubr.f32.gmra.mrb[0].mxu0 %v696
        %v901 = vpop.f32.mrb[0].mxu0
        %v902 = vadd.f32 0.0, %v901
        %v903 = vpop.f32.mrb[0].mxu0
        %904 = vmatprep.mubr.f32.mxu0 0.0
        %905 = vmatmul.mubr.f32.gmra.mrb[0].mxu0 %v699
        %v906 = vpop.f32.mrb[0].mxu0
        %v907 = vadd.f32 0.0, %v906
        %v908 = vpop.f32.mrb[0].mxu0
        %909 = vmatprep.mubr.f32.mxu0 0.0
        %910 = vmatmul.mubr.f32.gmra.mrb[0].mxu0 %v702
        %v911 = vpop.f32.mrb[0].mxu0
        %v912 = vadd.f32 0.0, %v911
        %v913 = vpop.f32.mrb[0].mxu0
        %914 = vmatprep.mubr.f32.mxu0 0.0
        %915 = vmatmul.mubr.f32.gmra.mrb[0].mxu0 %v705
        %v916 = vpop.f32.mrb[0].mxu0
        %v917 = vadd.f32 0.0, %v916
        %v918 = vpop.f32.mrb[0].mxu0
        %919 = vmatprep.mubr.f32.mxu0 0.0
        %920 = vmatmul.mubr.f32.gmra.mrb[0].mxu0 %v708
        %v921 = vpop.f32.mrb[0].mxu0
        %v922 = vadd.f32 0.0, %v921
        %v923 = vpop.f32.mrb[0].mxu0
        %924 = vmatprep.mubr.f32.mxu0 0.0
        %925 = vmatmul.mubr.f32.gmra.mrb[0].mxu0 %v711
        %v926 = vpop.f32.mrb[0].mxu0
        %v927 = vadd.f32 0.0, %v926
        %v928 = vpop.f32.mrb[0].mxu0
        %929 = vmatprep.mubr.f32.mxu0 0.0
        %930 = vmatmul.mubr.f32.gmra.mrb[0].mxu0 %v714
        %v931 = vpop.f32.mrb[0].mxu0
        %v932 = vadd.f32 0.0, %v931
        %v933 = vpop.f32.mrb[0].mxu0
        %934 = vmatprep.mubr.f32.mxu0 0.0
        %935 = vmatmul.mubr.f32.gmra.mrb[0].mxu0 %v717
        %v936 = vpop.f32.mrb[0].mxu0
        %v937 = vadd.f32 0.0, %v936
        %v938 = vpop.f32.mrb[0].mxu0
        %939 = vmatprep.mubr.f32.mxu0 0.0
        %940 = vmatmul.mubr.f32.gmra.mrb[0].mxu0 %v720
        %v941 = vpop.f32.mrb[0].mxu0
        %v942 = vadd.f32 0.0, %v941
        %v943 = vpop.f32.mrb[0].mxu0
        %944 = vmatprep.mubr.f32.mxu0 0.0
        %945 = vmatmul.mubr.f32.gmra.mrb[0].mxu0 %v723
        %v946 = vpop.f32.mrb[0].mxu0
        %v947 = vadd.f32 0.0, %v946
        %v948 = vpop.f32.mrb[0].mxu0
        %949 = vmatprep.mubr.f32.mxu0 0.0
        %950 = vmatmul.mubr.f32.gmra.mrb[0].mxu0 %v726
        %v951 = vpop.f32.mrb[0].mxu0
        %v952 = vadd.f32 0.0, %v951
        %v953 = vpop.f32.mrb[0].mxu0
        %954 = vmatprep.mubr.f32.mxu0 0.0
        %955 = vmatmul.mubr.f32.gmra.mrb[0].mxu0 %v729
        %v956 = vpop.f32.mrb[0].mxu0
        %v957 = vadd.f32 0.0, %v956
        %v958 = vpop.f32.mrb[0].mxu0
        %959 = vmatprep.mubr.f32.mxu0 0.0
        %960 = vmatmul.mubr.f32.gmra.mrb[0].mxu0 %v732
        %v961 = vpop.f32.mrb[0].mxu0
        %v962 = vadd.f32 0.0, %v961
        %v963 = vpop.f32.mrb[0].mxu0
        %964 = vmatprep.mubr.f32.mxu0 0.0
        %965 = vmatmul.mubr.f32.gmra.mrb[0].mxu0 %v735
        %v966 = vpop.f32.mrb[0].mxu0
        %v967 = vadd.f32 0.0, %v966
        %v968 = vpop.f32.mrb[0].mxu0
        %969 = vmatprep.mubr.f32.mxu0 0.0
        %970 = vmatmul.mubr.f32.gmra.mrb[0].mxu0 %v738
        %v971 = vpop.f32.mrb[0].mxu0
        %v972 = vadd.f32 0.0, %v971
        %v973 = vpop.f32.mrb[0].mxu0
        %974 = vmatprep.mubr.f32.mxu0 0.0
        %975 = vmatmul.mubr.f32.gmra.mrb[0].mxu0 %v741
        %v976 = vpop.f32.mrb[0].mxu0
        %v977 = vadd.f32 0.0, %v976
        %v978 = vpop.f32.mrb[0].mxu0
        %979 = vmatprep.mubr.f32.mxu0 0.0
        %980 = vmatmul.mubr.f32.gmra.mrb[0].mxu0 %v744
        %v981 = vpop.f32.mrb[0].mxu0
        %v982 = vadd.f32 0.0, %v981
        %v983 = vpop.f32.mrb[0].mxu0
        %984 = vmatprep.mubr.f32.mxu0 0.0
        %985 = vmatmul.mubr.f32.gmra.mrb[0].mxu0 %v747
        %v986 = vpop.f32.mrb[0].mxu0
        %v987 = vadd.f32 0.0, %v986
        %v988 = vpop.f32.mrb[0].mxu0
        %989 = vmatprep.mubr.f32.mxu0 0.0
        %990 = vmatmul.mubr.f32.gmra.mrb[0].mxu0 %v750
        %v991 = vpop.f32.mrb[0].mxu0
        %v992 = vadd.f32 0.0, %v991
        %v993 = vpop.f32.mrb[0].mxu0
        %994 = vmatprep.mubr.f32.mxu0 0.0
        %995 = vmatmul.mubr.f32.gmra.mrb[0].mxu0 %v753
        %v996 = vpop.f32.mrb[0].mxu0
        %v997 = vadd.f32 0.0, %v996
        %v998 = vpop.f32.mrb[0].mxu0
        %999 = vdwg.mxu0
        %v1000 = vmax.f32 %v822, %v882
        %v1001 = vmax.f32 %v827, %v887
        %v1002 = vmax.f32 %v832, %v892
        %v1003 = vmax.f32 %v837, %v897
        %v1004 = vmax.f32 %v842, %v902
        %v1005 = vmax.f32 %v847, %v907
        %v1006 = vmax.f32 %v852, %v912
        %v1007 = vmax.f32 %v857, %v917
        %v1008 = vmax.f32 %v862, %v922
        %v1009 = vmax.f32 %v867, %v927
        %v1010 = vmax.f32 %v872, %v932
        %v1011 = vmax.f32 %v877, %v937
        %v1012 = vmax.f32 %v1000, %v942
        %v1013 = vmax.f32 %v1001, %v947
        %v1014 = vmax.f32 %v1002, %v952
        %v1015 = vmax.f32 %v1003, %v957
        %v1016 = vmax.f32 %v1004, %v962
        %v1017 = vmax.f32 %v1005, %v967
        %v1018 = vmax.f32 %v1006, %v972
        %v1019 = vmax.f32 %v1007, %v977
        %v1020 = vmax.f32 %v1008, %v982
        %v1021 = vmax.f32 %v1009, %v987
        %v1022 = vmax.f32 %v1010, %v992
        %v1023 = vmax.f32 %v1011, %v997
        %v1024 = vmax.f32 %v1012, 0.0
        %v1025 = vmax.f32 %v1013, 0.0
        %v1026 = vmax.f32 %v1014, 0.0
        %v1027 = vmax.f32 %v1015, 0.0
        %v1028 = vmax.f32 %v1016, 0.0
        %v1029 = vmax.f32 %v1017, 0.0
        %v1030 = vmax.f32 %v1018, 0.0
        %v1031 = vmax.f32 %v1019, 0.0
        %v1032 = vmax.f32 %v1020, 0.0
        %v1033 = vmax.f32 %v1021, 0.0
        %v1034 = vmax.f32 %v1022, 0.0
        %v1035 = vmax.f32 %v1023, 0.0
        %v1036 = vld [vmem:[%s4] sm:$0xff]
        %v1037 = vld [vmem:[%s4 + $0x8] sm:$0xff]
        %v1038 = vld [vmem:[%s4 + $0x10] sm:$0xff]
        %v1039 = vld [vmem:[%s4 + $0x18] sm:$0xff]
        %v1040 = vld [vmem:[%s4 + $0x20] sm:$0xff]
        %v1041 = vld [vmem:[%s4 + $0x28] sm:$0xff]
        %v1042 = vld [vmem:[%s4 + $0x30] sm:$0xff]
        %v1043 = vld [vmem:[%s4 + $0x38] sm:$0xff]
        %v1044 = vld [vmem:[%s4 + $0x40] sm:$0xff]
        %v1045 = vld [vmem:[%s4 + $0x48] sm:$0xff]
        %v1046 = vld [vmem:[%s4 + $0x50] sm:$0xff]
        %v1047 = vld [vmem:[%s4 + $0x58] sm:$0xff]
        %1049 = vset.pattern.permute.xlu0 0
        %1050 = vperm.xlu0 %1049, %v1036
        %v1051 = vpop.permute.xlu0 %1050
        %1054 = vset.pattern.permute.xlu0 0
        %1055 = vperm.xlu0 %1054, %v1037
        %v1056 = vpop.permute.xlu0 %1055
        %1059 = vset.pattern.permute.xlu0 0
        %1060 = vperm.xlu0 %1059, %v1038
        %v1061 = vpop.permute.xlu0 %1060
        %1064 = vset.pattern.permute.xlu0 0
        %1065 = vperm.xlu0 %1064, %v1039
        %v1066 = vpop.permute.xlu0 %1065
        %1069 = vset.pattern.permute.xlu0 0
        %1070 = vperm.xlu0 %1069, %v1040
        %v1071 = vpop.permute.xlu0 %1070
        %1074 = vset.pattern.permute.xlu0 0
        %1075 = vperm.xlu0 %1074, %v1041
        %v1076 = vpop.permute.xlu0 %1075
        %1079 = vset.pattern.permute.xlu0 0
        %1080 = vperm.xlu0 %1079, %v1042
        %v1081 = vpop.permute.xlu0 %1080
        %1084 = vset.pattern.permute.xlu0 0
        %1085 = vperm.xlu0 %1084, %v1043
        %v1086 = vpop.permute.xlu0 %1085
        %1089 = vset.pattern.permute.xlu0 0
        %1090 = vperm.xlu0 %1089, %v1044
        %v1091 = vpop.permute.xlu0 %1090
        %1094 = vset.pattern.permute.xlu0 0
        %1095 = vperm.xlu0 %1094, %v1045
        %v1096 = vpop.permute.xlu0 %1095
        %1099 = vset.pattern.permute.xlu0 0
        %1100 = vperm.xlu0 %1099, %v1046
        %v1101 = vpop.permute.xlu0 %1100
        %1104 = vset.pattern.permute.xlu0 0
        %1105 = vperm.xlu0 %1104, %v1047
        %v1106 = vpop.permute.xlu0 %1105
        %v1108 = vadd.f32 %v1024, %v1051
        %v1109 = vadd.f32 %v1025, %v1056
        %v1110 = vadd.f32 %v1026, %v1061
        %v1111 = vadd.f32 %v1027, %v1066
        %v1112 = vadd.f32 %v1028, %v1071
        %v1113 = vadd.f32 %v1029, %v1076
        %v1114 = vadd.f32 %v1030, %v1081
        %v1115 = vadd.f32 %v1031, %v1086
        %v1116 = vadd.f32 %v1032, %v1091
        %v1117 = vadd.f32 %v1033, %v1096
        %v1118 = vadd.f32 %v1034, %v1101
        %v1119 = vadd.f32 %v1035, %v1106
        %v1120 = vmax.f32 %v1108, 0.0
        %v1121 = vmax.f32 %v1109, 0.0
        %v1122 = vmax.f32 %v1110, 0.0
        %v1123 = vmax.f32 %v1111, 0.0
        %v1124 = vmax.f32 %v1112, 0.0
        %v1125 = vmax.f32 %v1113, 0.0
        %v1126 = vmax.f32 %v1114, 0.0
        %v1127 = vmax.f32 %v1115, 0.0
        %v1128 = vmax.f32 %v1116, 0.0
        %v1129 = vmax.f32 %v1117, 0.0
        %v1130 = vmax.f32 %v1118, 0.0
        %v1131 = vmax.f32 %v1119, 0.0
        %v1132 = vld [vmem:[%s5] sm:$0xff]
        %v1133 = vld [vmem:[%s5 + $0x8] sm:$0xff]
        %v1134 = vld [vmem:[%s5 + $0x10] sm:$0xff]
        %v1135 = vld [vmem:[%s5 + $0x18] sm:$0xff]
        %v1136 = vld [vmem:[%s5 + $0x20] sm:$0xff]
        %v1137 = vld [vmem:[%s5 + $0x28] sm:$0xff]
        %v1138 = vld [vmem:[%s5 + $0x30] sm:$0xff]
        %v1139 = vld [vmem:[%s5 + $0x38] sm:$0xff]
        %v1140 = vld [vmem:[%s5 + $0x40] sm:$0xff]
        %v1141 = vld [vmem:[%s5 + $0x48] sm:$0xff]
        %v1142 = vld [vmem:[%s5 + $0x50] sm:$0xff]
        %v1143 = vld [vmem:[%s5 + $0x58] sm:$0xff]
        %v1144 = vld [vmem:[%s5 + $0x60] sm:$0xff]
        %v1145 = vld [vmem:[%s5 + $0x68] sm:$0xff]
        %v1146 = vld [vmem:[%s5 + $0x70] sm:$0xff]
        %v1147 = vld [vmem:[%s5 + $0x78] sm:$0xff]
        %v1148 = vld [vmem:[%s5 + $0x80] sm:$0xff]
        %v1149 = vld [vmem:[%s5 + $0x88] sm:$0xff]
        %v1150 = vld [vmem:[%s5 + $0x90] sm:$0xff]
        %v1151 = vld [vmem:[%s5 + $0x98] sm:$0xff]
        %v1152 = vld [vmem:[%s5 + $0xa0] sm:$0xff]
        %v1153 = vld [vmem:[%s5 + $0xa8] sm:$0xff]
        %v1154 = vld [vmem:[%s5 + $0xb0] sm:$0xff]
        %v1155 = vld [vmem:[%s5 + $0xb8] sm:$0xff]
        %v1156 = vld [vmem:[%s5 + $0xc0] sm:$0xff]
        %v1157 = vld [vmem:[%s5 + $0xc8] sm:$0xff]
        %v1158 = vld [vmem:[%s5 + $0xd0] sm:$0xff]
        %v1159 = vld [vmem:[%s5 + $0xd8] sm:$0xff]
        %v1160 = vld [vmem:[%s5 + $0xe0] sm:$0xff]
        %v1161 = vld [vmem:[%s5 + $0xe8] sm:$0xff]
        %v1162 = vld [vmem:[%s5 + $0xf0] sm:$0xff]
        %v1163 = vld [vmem:[%s5 + $0xf8] sm:$0xff]
        %v1164 = vld [vmem:[%s5 + $0x100] sm:$0xff]
        %v1165 = vld [vmem:[%s5 + $0x108] sm:$0xff]
        %v1166 = vld [vmem:[%s5 + $0x110] sm:$0xff]
        %v1167 = vld [vmem:[%s5 + $0x118] sm:$0xff]
        %vm1168 = vcmask 785408
        %v1170 = vsel %vm1168, %v1132, 0
        %v1173 = vsel %vm1168, %v1133, 0
        %v1176 = vsel %vm1168, %v1134, 0
        %v1179 = vsel %vm1168, %v1135, 0
        %v1182 = vsel %vm1168, %v1136, 0
        %v1185 = vsel %vm1168, %v1137, 0
        %v1188 = vsel %vm1168, %v1138, 0
        %v1191 = vsel %vm1168, %v1139, 0
        %v1194 = vsel %vm1168, %v1140, 0
        %v1197 = vsel %vm1168, %v1141, 0
        %v1200 = vsel %vm1168, %v1142, 0
        %v1203 = vsel %vm1168, %v1143, 0
        %v1206 = vsel %vm1168, %v1144, 0
        %v1209 = vsel %vm1168, %v1145, 0
        %v1212 = vsel %vm1168, %v1146, 0
        %v1215 = vsel %vm1168, %v1147, 0
        %v1218 = vsel %vm1168, %v1148, 0
        %v1221 = vsel %vm1168, %v1149, 0
        %v1224 = vsel %vm1168, %v1150, 0
        %v1227 = vsel %vm1168, %v1151, 0
        %v1230 = vsel %vm1168, %v1152, 0
        %v1233 = vsel %vm1168, %v1153, 0
        %v1236 = vsel %vm1168, %v1154, 0
        %v1239 = vsel %vm1168, %v1155, 0
        %v1242 = vsel %vm1168, %v1156, 0
        %v1245 = vsel %vm1168, %v1157, 0
        %v1248 = vsel %vm1168, %v1158, 0
        %v1251 = vsel %vm1168, %v1159, 0
        %v1254 = vsel %vm1168, %v1160, 0
        %v1257 = vsel %vm1168, %v1161, 0
        %v1260 = vsel %vm1168, %v1162, 0
        %v1263 = vsel %vm1168, %v1163, 0
        %v1266 = vsel %vm1168, %v1164, 0
        %v1269 = vsel %vm1168, %v1165, 0
        %v1272 = vsel %vm1168, %v1166, 0
        %v1275 = vsel %vm1168, %v1167, 0
        %1277 = vmatprep.subr.mxu0 0.0
        %1278 = vmatpush1.msra.mxu0 %v1120
        %1279 = vmatprep.subr.mxu0 0.0
        %1280 = vmatpush1.msra.mxu0 %v1121
        %1281 = vmatprep.subr.mxu0 0.0
        %1282 = vmatpush1.msra.mxu0 %v1122
        %1283 = vmatprep.subr.mxu0 0.0
        %1284 = vmatpush1.msra.mxu0 %v1123
        %1285 = vmatprep.subr.mxu0 0.0
        %1286 = vmatpush1.msra.mxu0 %v1124
        %1287 = vmatprep.subr.mxu0 0.0
        %1288 = vmatpush1.msra.mxu0 %v1125
        %1289 = vmatprep.subr.mxu0 0.0
        %1290 = vmatpush1.msra.mxu0 %v1126
        %1291 = vmatprep.subr.mxu0 0.0
        %1292 = vmatpush1.msra.mxu0 %v1127
        %1293 = vmatprep.subr.mxu0 0.0
        %1294 = vmatpush1.msra.mxu0 %v1128
        %1295 = vmatprep.subr.mxu0 0.0
        %1296 = vmatpush1.msra.mxu0 %v1129
        %1297 = vmatprep.subr.mxu0 0.0
        %1298 = vmatpush1.msra.mxu0 %v1130
        %1299 = vmatprep.subr.mxu0 0.0
        %1300 = vmatpush1.msra.mxu0 %v1131
        %1301 = vmatprep.subr.mxu0 0.0
        %1302 = vmatpush1.msra.mxu0 0.0
        %1303 = vmatprep.subr.mxu0 0.0
        %1304 = vmatpush1.msra.mxu0 0.0
        %1305 = vmatprep.subr.mxu0 0.0
        %1306 = vmatpush1.msra.mxu0 0.0
        %1307 = vmatprep.subr.mxu0 0.0
        %1308 = vmatpush1.msra.mxu0 0.0
        %1309 = vmatprep.subr.mxu0 0.0
        %1310 = vmatpush1.msra.mxu0 0.0
        %1311 = vmatprep.subr.mxu0 0.0
        %1312 = vmatpush1.msra.mxu0 0.0
        %1313 = vmatprep.subr.mxu0 0.0
        %1314 = vmatpush1.msra.mxu0 0.0
        %1315 = vmatprep.subr.mxu0 0.0
        %1316 = vmatpush1.msra.mxu0 0.0
        %1317 = vmatprep.subr.mxu0 0.0
        %1318 = vmatpush1.msra.mxu0 0.0
        %1319 = vmatprep.subr.mxu0 0.0
        %1320 = vmatpush1.msra.mxu0 0.0
        %1321 = vmatprep.subr.mxu0 0.0
        %1322 = vmatpush1.msra.mxu0 0.0
        %1323 = vmatprep.subr.mxu0 0.0
        %1324 = vmatpush1.msra.mxu0 0.0
        %1325 = vmatprep.subr.mxu0 0.0
        %1326 = vmatpush1.msra.mxu0 0.0
        %1327 = vmatprep.subr.mxu0 0.0
        %1328 = vmatpush1.msra.mxu0 0.0
        %1329 = vmatprep.subr.mxu0 0.0
        %1330 = vmatpush1.msra.mxu0 0.0
        %1331 = vmatprep.subr.mxu0 0.0
        %1332 = vmatpush1.msra.mxu0 0.0
        %1333 = vmatprep.subr.mxu0 0.0
        %1334 = vmatpush1.msra.mxu0 0.0
        %1335 = vmatprep.subr.mxu0 0.0
        %1336 = vmatpush1.msra.mxu0 0.0
        %1337 = vmatprep.subr.mxu0 0.0
        %1338 = vmatpush1.msra.mxu0 0.0
        %1339 = vmatprep.subr.mxu0 0.0
        %1340 = vmatpush1.msra.mxu0 0.0
        %1341 = vmatprep.mubr.f32.mxu0 0.0
        %1342 = vmatmul.mubr.f32.gmra.mrb[0].mxu0 %v1170
        %v1343 = vpop.f32.mrb[0].mxu0
        %v1344 = vadd.f32 0.0, %v1343
        %v1345 = vpop.f32.mrb[0].mxu0
        %1346 = vmatprep.mubr.f32.mxu0 0.0
        %1347 = vmatmul.mubr.f32.gmra.mrb[0].mxu0 %v1173
        %v1348 = vpop.f32.mrb[0].mxu0
        %v1349 = vadd.f32 0.0, %v1348
        %v1350 = vpop.f32.mrb[0].mxu0
        %1351 = vmatprep.mubr.f32.mxu0 0.0
        %1352 = vmatmul.mubr.f32.gmra.mrb[0].mxu0 %v1176
        %v1353 = vpop.f32.mrb[0].mxu0
        %v1354 = vadd.f32 0.0, %v1353
        %v1355 = vpop.f32.mrb[0].mxu0
        %1356 = vmatprep.mubr.f32.mxu0 0.0
        %1357 = vmatmul.mubr.f32.gmra.mrb[0].mxu0 %v1179
        %v1358 = vpop.f32.mrb[0].mxu0
        %v1359 = vadd.f32 0.0, %v1358
        %v1360 = vpop.f32.mrb[0].mxu0
        %1361 = vmatprep.mubr.f32.mxu0 0.0
        %1362 = vmatmul.mubr.f32.gmra.mrb[0].mxu0 %v1182
        %v1363 = vpop.f32.mrb[0].mxu0
        %v1364 = vadd.f32 0.0, %v1363
        %v1365 = vpop.f32.mrb[0].mxu0
        %1366 = vmatprep.mubr.f32.mxu0 0.0
        %1367 = vmatmul.mubr.f32.gmra.mrb[0].mxu0 %v1185
        %v1368 = vpop.f32.mrb[0].mxu0
        %v1369 = vadd.f32 0.0, %v1368
        %v1370 = vpop.f32.mrb[0].mxu0
        %1371 = vmatprep.mubr.f32.mxu0 0.0
        %1372 = vmatmul.mubr.f32.gmra.mrb[0].mxu0 %v1188
        %v1373 = vpop.f32.mrb[0].mxu0
        %v1374 = vadd.f32 0.0, %v1373
        %v1375 = vpop.f32.mrb[0].mxu0
        %1376 = vmatprep.mubr.f32.mxu0 0.0
        %1377 = vmatmul.mubr.f32.gmra.mrb[0].mxu0 %v1191
        %v1378 = vpop.f32.mrb[0].mxu0
        %v1379 = vadd.f32 0.0, %v1378
        %v1380 = vpop.f32.mrb[0].mxu0
        %1381 = vmatprep.mubr.f32.mxu0 0.0
        %1382 = vmatmul.mubr.f32.gmra.mrb[0].mxu0 %v1194
        %v1383 = vpop.f32.mrb[0].mxu0
        %v1384 = vadd.f32 0.0, %v1383
        %v1385 = vpop.f32.mrb[0].mxu0
        %1386 = vmatprep.mubr.f32.mxu0 0.0
        %1387 = vmatmul.mubr.f32.gmra.mrb[0].mxu0 %v1197
        %v1388 = vpop.f32.mrb[0].mxu0
        %v1389 = vadd.f32 0.0, %v1388
        %v1390 = vpop.f32.mrb[0].mxu0
        %1391 = vmatprep.mubr.f32.mxu0 0.0
        %1392 = vmatmul.mubr.f32.gmra.mrb[0].mxu0 %v1200
        %v1393 = vpop.f32.mrb[0].mxu0
        %v1394 = vadd.f32 0.0, %v1393
        %v1395 = vpop.f32.mrb[0].mxu0
        %1396 = vmatprep.mubr.f32.mxu0 0.0
        %1397 = vmatmul.mubr.f32.gmra.mrb[0].mxu0 %v1203
        %v1398 = vpop.f32.mrb[0].mxu0
        %v1399 = vadd.f32 0.0, %v1398
        %v1400 = vpop.f32.mrb[0].mxu0
        %1401 = vmatprep.mubr.f32.mxu0 0.0
        %1402 = vmatmul.mubr.f32.gmra.mrb[0].mxu0 %v1206
        %v1403 = vpop.f32.mrb[0].mxu0
        %v1404 = vadd.f32 0.0, %v1403
        %v1405 = vpop.f32.mrb[0].mxu0
        %1406 = vmatprep.mubr.f32.mxu0 0.0
        %1407 = vmatmul.mubr.f32.gmra.mrb[0].mxu0 %v1209
        %v1408 = vpop.f32.mrb[0].mxu0
        %v1409 = vadd.f32 0.0, %v1408
        %v1410 = vpop.f32.mrb[0].mxu0
        %1411 = vmatprep.mubr.f32.mxu0 0.0
        %1412 = vmatmul.mubr.f32.gmra.mrb[0].mxu0 %v1212
        %v1413 = vpop.f32.mrb[0].mxu0
        %v1414 = vadd.f32 0.0, %v1413
        %v1415 = vpop.f32.mrb[0].mxu0
        %1416 = vmatprep.mubr.f32.mxu0 0.0
        %1417 = vmatmul.mubr.f32.gmra.mrb[0].mxu0 %v1215
        %v1418 = vpop.f32.mrb[0].mxu0
        %v1419 = vadd.f32 0.0, %v1418
        %v1420 = vpop.f32.mrb[0].mxu0
        %1421 = vmatprep.mubr.f32.mxu0 0.0
        %1422 = vmatmul.mubr.f32.gmra.mrb[0].mxu0 %v1218
        %v1423 = vpop.f32.mrb[0].mxu0
        %v1424 = vadd.f32 0.0, %v1423
        %v1425 = vpop.f32.mrb[0].mxu0
        %1426 = vmatprep.mubr.f32.mxu0 0.0
        %1427 = vmatmul.mubr.f32.gmra.mrb[0].mxu0 %v1221
        %v1428 = vpop.f32.mrb[0].mxu0
        %v1429 = vadd.f32 0.0, %v1428
        %v1430 = vpop.f32.mrb[0].mxu0
        %1431 = vmatprep.mubr.f32.mxu0 0.0
        %1432 = vmatmul.mubr.f32.gmra.mrb[0].mxu0 %v1224
        %v1433 = vpop.f32.mrb[0].mxu0
        %v1434 = vadd.f32 0.0, %v1433
        %v1435 = vpop.f32.mrb[0].mxu0
        %1436 = vmatprep.mubr.f32.mxu0 0.0
        %1437 = vmatmul.mubr.f32.gmra.mrb[0].mxu0 %v1227
        %v1438 = vpop.f32.mrb[0].mxu0
        %v1439 = vadd.f32 0.0, %v1438
        %v1440 = vpop.f32.mrb[0].mxu0
        %1441 = vmatprep.mubr.f32.mxu0 0.0
        %1442 = vmatmul.mubr.f32.gmra.mrb[0].mxu0 %v1230
        %v1443 = vpop.f32.mrb[0].mxu0
        %v1444 = vadd.f32 0.0, %v1443
        %v1445 = vpop.f32.mrb[0].mxu0
        %1446 = vmatprep.mubr.f32.mxu0 0.0
        %1447 = vmatmul.mubr.f32.gmra.mrb[0].mxu0 %v1233
        %v1448 = vpop.f32.mrb[0].mxu0
        %v1449 = vadd.f32 0.0, %v1448
        %v1450 = vpop.f32.mrb[0].mxu0
        %1451 = vmatprep.mubr.f32.mxu0 0.0
        %1452 = vmatmul.mubr.f32.gmra.mrb[0].mxu0 %v1236
        %v1453 = vpop.f32.mrb[0].mxu0
        %v1454 = vadd.f32 0.0, %v1453
        %v1455 = vpop.f32.mrb[0].mxu0
        %1456 = vmatprep.mubr.f32.mxu0 0.0
        %1457 = vmatmul.mubr.f32.gmra.mrb[0].mxu0 %v1239
        %v1458 = vpop.f32.mrb[0].mxu0
        %v1459 = vadd.f32 0.0, %v1458
        %v1460 = vpop.f32.mrb[0].mxu0
        %1461 = vmatprep.mubr.f32.mxu0 0.0
        %1462 = vmatmul.mubr.f32.gmra.mrb[0].mxu0 %v1242
        %v1463 = vpop.f32.mrb[0].mxu0
        %v1464 = vadd.f32 0.0, %v1463
        %v1465 = vpop.f32.mrb[0].mxu0
        %1466 = vmatprep.mubr.f32.mxu0 0.0
        %1467 = vmatmul.mubr.f32.gmra.mrb[0].mxu0 %v1245
        %v1468 = vpop.f32.mrb[0].mxu0
        %v1469 = vadd.f32 0.0, %v1468
        %v1470 = vpop.f32.mrb[0].mxu0
        %1471 = vmatprep.mubr.f32.mxu0 0.0
        %1472 = vmatmul.mubr.f32.gmra.mrb[0].mxu0 %v1248
        %v1473 = vpop.f32.mrb[0].mxu0
        %v1474 = vadd.f32 0.0, %v1473
        %v1475 = vpop.f32.mrb[0].mxu0
        %1476 = vmatprep.mubr.f32.mxu0 0.0
        %1477 = vmatmul.mubr.f32.gmra.mrb[0].mxu0 %v1251
        %v1478 = vpop.f32.mrb[0].mxu0
        %v1479 = vadd.f32 0.0, %v1478
        %v1480 = vpop.f32.mrb[0].mxu0
        %1481 = vmatprep.mubr.f32.mxu0 0.0
        %1482 = vmatmul.mubr.f32.gmra.mrb[0].mxu0 %v1254
        %v1483 = vpop.f32.mrb[0].mxu0
        %v1484 = vadd.f32 0.0, %v1483
        %v1485 = vpop.f32.mrb[0].mxu0
        %1486 = vmatprep.mubr.f32.mxu0 0.0
        %1487 = vmatmul.mubr.f32.gmra.mrb[0].mxu0 %v1257
        %v1488 = vpop.f32.mrb[0].mxu0
        %v1489 = vadd.f32 0.0, %v1488
        %v1490 = vpop.f32.mrb[0].mxu0
        %1491 = vmatprep.mubr.f32.mxu0 0.0
        %1492 = vmatmul.mubr.f32.gmra.mrb[0].mxu0 %v1260
        %v1493 = vpop.f32.mrb[0].mxu0
        %v1494 = vadd.f32 0.0, %v1493
        %v1495 = vpop.f32.mrb[0].mxu0
        %1496 = vmatprep.mubr.f32.mxu0 0.0
        %1497 = vmatmul.mubr.f32.gmra.mrb[0].mxu0 %v1263
        %v1498 = vpop.f32.mrb[0].mxu0
        %v1499 = vadd.f32 0.0, %v1498
        %v1500 = vpop.f32.mrb[0].mxu0
        %1501 = vmatprep.mubr.f32.mxu0 0.0
        %1502 = vmatmul.mubr.f32.gmra.mrb[0].mxu0 %v1266
        %v1503 = vpop.f32.mrb[0].mxu0
        %v1504 = vadd.f32 0.0, %v1503
        %v1505 = vpop.f32.mrb[0].mxu0
        %1506 = vmatprep.mubr.f32.mxu0 0.0
        %1507 = vmatmul.mubr.f32.gmra.mrb[0].mxu0 %v1269
        %v1508 = vpop.f32.mrb[0].mxu0
        %v1509 = vadd.f32 0.0, %v1508
        %v1510 = vpop.f32.mrb[0].mxu0
        %1511 = vmatprep.mubr.f32.mxu0 0.0
        %1512 = vmatmul.mubr.f32.gmra.mrb[0].mxu0 %v1272
        %v1513 = vpop.f32.mrb[0].mxu0
        %v1514 = vadd.f32 0.0, %v1513
        %v1515 = vpop.f32.mrb[0].mxu0
        %1516 = vmatprep.mubr.f32.mxu0 0.0
        %1517 = vmatmul.mubr.f32.gmra.mrb[0].mxu0 %v1275
        %v1518 = vpop.f32.mrb[0].mxu0
        %v1519 = vadd.f32 0.0, %v1518
        %v1520 = vpop.f32.mrb[0].mxu0
        %1521 = vdwg.mxu0
        %v1522 = vmax.f32 %v1344, %v1404
        %v1523 = vmax.f32 %v1349, %v1409
        %v1524 = vmax.f32 %v1354, %v1414
        %v1525 = vmax.f32 %v1359, %v1419
        %v1526 = vmax.f32 %v1364, %v1424
        %v1527 = vmax.f32 %v1369, %v1429
        %v1528 = vmax.f32 %v1374, %v1434
        %v1529 = vmax.f32 %v1379, %v1439
        %v1530 = vmax.f32 %v1384, %v1444
        %v1531 = vmax.f32 %v1389, %v1449
        %v1532 = vmax.f32 %v1394, %v1454
        %v1533 = vmax.f32 %v1399, %v1459
        %v1534 = vmax.f32 %v1522, %v1464
        %v1535 = vmax.f32 %v1523, %v1469
        %v1536 = vmax.f32 %v1524, %v1474
        %v1537 = vmax.f32 %v1525, %v1479
        %v1538 = vmax.f32 %v1526, %v1484
        %v1539 = vmax.f32 %v1527, %v1489
        %v1540 = vmax.f32 %v1528, %v1494
        %v1541 = vmax.f32 %v1529, %v1499
        %v1542 = vmax.f32 %v1530, %v1504
        %v1543 = vmax.f32 %v1531, %v1509
        %v1544 = vmax.f32 %v1532, %v1514
        %v1545 = vmax.f32 %v1533, %v1519
        %v1546 = vmax.f32 %v1534, 0.0
        %v1547 = vmax.f32 %v1535, 0.0
        %v1548 = vmax.f32 %v1536, 0.0
        %v1549 = vmax.f32 %v1537, 0.0
        %v1550 = vmax.f32 %v1538, 0.0
        %v1551 = vmax.f32 %v1539, 0.0
        %v1552 = vmax.f32 %v1540, 0.0
        %v1553 = vmax.f32 %v1541, 0.0
        %v1554 = vmax.f32 %v1542, 0.0
        %v1555 = vmax.f32 %v1543, 0.0
        %v1556 = vmax.f32 %v1544, 0.0
        %v1557 = vmax.f32 %v1545, 0.0
        %v1558 = vld [vmem:[%s6] sm:$0xff]
        %v1559 = vld [vmem:[%s6 + $0x8] sm:$0xff]
        %v1560 = vld [vmem:[%s6 + $0x10] sm:$0xff]
        %v1561 = vld [vmem:[%s6 + $0x18] sm:$0xff]
        %v1562 = vld [vmem:[%s6 + $0x20] sm:$0xff]
        %v1563 = vld [vmem:[%s6 + $0x28] sm:$0xff]
        %v1564 = vld [vmem:[%s6 + $0x30] sm:$0xff]
        %v1565 = vld [vmem:[%s6 + $0x38] sm:$0xff]
        %v1566 = vld [vmem:[%s6 + $0x40] sm:$0xff]
        %v1567 = vld [vmem:[%s6 + $0x48] sm:$0xff]
        %v1568 = vld [vmem:[%s6 + $0x50] sm:$0xff]
        %v1569 = vld [vmem:[%s6 + $0x58] sm:$0xff]
        %1571 = vset.pattern.permute.xlu0 0
        %1572 = vperm.xlu0 %1571, %v1558
        %v1573 = vpop.permute.xlu0 %1572
        %1576 = vset.pattern.permute.xlu0 0
        %1577 = vperm.xlu0 %1576, %v1559
        %v1578 = vpop.permute.xlu0 %1577
        %1581 = vset.pattern.permute.xlu0 0
        %1582 = vperm.xlu0 %1581, %v1560
        %v1583 = vpop.permute.xlu0 %1582
        %1586 = vset.pattern.permute.xlu0 0
        %1587 = vperm.xlu0 %1586, %v1561
        %v1588 = vpop.permute.xlu0 %1587
        %1591 = vset.pattern.permute.xlu0 0
        %1592 = vperm.xlu0 %1591, %v1562
        %v1593 = vpop.permute.xlu0 %1592
        %1596 = vset.pattern.permute.xlu0 0
        %1597 = vperm.xlu0 %1596, %v1563
        %v1598 = vpop.permute.xlu0 %1597
        %1601 = vset.pattern.permute.xlu0 0
        %1602 = vperm.xlu0 %1601, %v1564
        %v1603 = vpop.permute.xlu0 %1602
        %1606 = vset.pattern.permute.xlu0 0
        %1607 = vperm.xlu0 %1606, %v1565
        %v1608 = vpop.permute.xlu0 %1607
        %1611 = vset.pattern.permute.xlu0 0
        %1612 = vperm.xlu0 %1611, %v1566
        %v1613 = vpop.permute.xlu0 %1612
        %1616 = vset.pattern.permute.xlu0 0
        %1617 = vperm.xlu0 %1616, %v1567
        %v1618 = vpop.permute.xlu0 %1617
        %1621 = vset.pattern.permute.xlu0 0
        %1622 = vperm.xlu0 %1621, %v1568
        %v1623 = vpop.permute.xlu0 %1622
        %1626 = vset.pattern.permute.xlu0 0
        %1627 = vperm.xlu0 %1626, %v1569
        %v1628 = vpop.permute.xlu0 %1627
        %v1630 = vadd.f32 %v1546, %v1573
        %v1631 = vadd.f32 %v1547, %v1578
        %v1632 = vadd.f32 %v1548, %v1583
        %v1633 = vadd.f32 %v1549, %v1588
        %v1634 = vadd.f32 %v1550, %v1593
        %v1635 = vadd.f32 %v1551, %v1598
        %v1636 = vadd.f32 %v1552, %v1603
        %v1637 = vadd.f32 %v1553, %v1608
        %v1638 = vadd.f32 %v1554, %v1613
        %v1639 = vadd.f32 %v1555, %v1618
        %v1640 = vadd.f32 %v1556, %v1623
        %v1641 = vadd.f32 %v1557, %v1628
        %v1642 = vmax.f32 %v1630, 0.0
        %v1643 = vmax.f32 %v1631, 0.0
        %v1644 = vmax.f32 %v1632, 0.0
        %v1645 = vmax.f32 %v1633, 0.0
        %v1646 = vmax.f32 %v1634, 0.0
        %v1647 = vmax.f32 %v1635, 0.0
        %v1648 = vmax.f32 %v1636, 0.0
        %v1649 = vmax.f32 %v1637, 0.0
        %v1650 = vmax.f32 %v1638, 0.0
        %v1651 = vmax.f32 %v1639, 0.0
        %v1652 = vmax.f32 %v1640, 0.0
        %v1653 = vmax.f32 %v1641, 0.0
        %v1654 = vld [vmem:[%s7] sm:$0xff]
        %v1655 = vld [vmem:[%s7 + $0x8] sm:$0xff]
        %v1656 = vld [vmem:[%s7 + $0x10] sm:$0xff]
        %v1657 = vld [vmem:[%s7 + $0x18] sm:$0xff]
        %v1658 = vld [vmem:[%s8] sm:$0xff]
        %v1659 = vld [vmem:[%s8 + $0x8] sm:$0xff]
        %v1660 = vld [vmem:[%s8 + $0x10] sm:$0xff]
        %v1661 = vld [vmem:[%s8 + $0x18] sm:$0xff]
        %1663 = vset.pattern.permute.xlu0 0
        %1664 = vperm.xlu0 %1663, %v1658
        %v1665 = vpop.permute.xlu0 %1664
        %1668 = vset.pattern.permute.xlu0 0
        %1669 = vperm.xlu0 %1668, %v1659
        %v1670 = vpop.permute.xlu0 %1669
        %1673 = vset.pattern.permute.xlu0 0
        %1674 = vperm.xlu0 %1673, %v1660
        %v1675 = vpop.permute.xlu0 %1674
        %1678 = vset.pattern.permute.xlu0 0
        %1679 = vperm.xlu0 %1678, %v1661
        %v1680 = vpop.permute.xlu0 %1679
        %v1683 = vsel %vm1168, %v1654, 0
        %v1686 = vsel %vm1168, %v1655, 0
        %v1689 = vsel %vm1168, %v1656, 0
        %v1692 = vsel %vm1168, %v1657, 0
        %1694 = vmatprep.subr.mxu0 0.0
        %1695 = vmatpush1.msra.mxu0 %v1642
        %1696 = vmatprep.subr.mxu0 0.0
        %1697 = vmatpush1.msra.mxu0 %v1643
        %1698 = vmatprep.subr.mxu0 0.0
        %1699 = vmatpush1.msra.mxu0 %v1644
        %1700 = vmatprep.subr.mxu0 0.0
        %1701 = vmatpush1.msra.mxu0 %v1645
        %1702 = vmatprep.subr.mxu0 0.0
        %1703 = vmatpush1.msra.mxu0 %v1646
        %1704 = vmatprep.subr.mxu0 0.0
        %1705 = vmatpush1.msra.mxu0 %v1647
        %1706 = vmatprep.subr.mxu0 0.0
        %1707 = vmatpush1.msra.mxu0 %v1648
        %1708 = vmatprep.subr.mxu0 0.0
        %1709 = vmatpush1.msra.mxu0 %v1649
        %1710 = vmatprep.subr.mxu0 0.0
        %1711 = vmatpush1.msra.mxu0 %v1650
        %1712 = vmatprep.subr.mxu0 0.0
        %1713 = vmatpush1.msra.mxu0 %v1651
        %1714 = vmatprep.subr.mxu0 0.0
        %1715 = vmatpush1.msra.mxu0 %v1652
        %1716 = vmatprep.subr.mxu0 0.0
        %1717 = vmatpush1.msra.mxu0 %v1653
        %1718 = vmatprep.subr.mxu0 0.0
        %1719 = vmatpush1.msra.mxu0 0.0
        %1720 = vmatprep.subr.mxu0 0.0
        %1721 = vmatpush1.msra.mxu0 0.0
        %1722 = vmatprep.subr.mxu0 0.0
        %1723 = vmatpush1.msra.mxu0 0.0
        %1724 = vmatprep.subr.mxu0 0.0
        %1725 = vmatpush1.msra.mxu0 0.0
        %1726 = vmatprep.subr.mxu0 0.0
        %1727 = vmatpush1.msra.mxu0 0.0
        %1728 = vmatprep.subr.mxu0 0.0
        %1729 = vmatpush1.msra.mxu0 0.0
        %1730 = vmatprep.subr.mxu0 0.0
        %1731 = vmatpush1.msra.mxu0 0.0
        %1732 = vmatprep.subr.mxu0 0.0
        %1733 = vmatpush1.msra.mxu0 0.0
        %1734 = vmatprep.subr.mxu0 0.0
        %1735 = vmatpush1.msra.mxu0 0.0
        %1736 = vmatprep.subr.mxu0 0.0
        %1737 = vmatpush1.msra.mxu0 0.0
        %1738 = vmatprep.subr.mxu0 0.0
        %1739 = vmatpush1.msra.mxu0 0.0
        %1740 = vmatprep.subr.mxu0 0.0
        %1741 = vmatpush1.msra.mxu0 0.0
        %1742 = vmatprep.subr.mxu0 0.0
        %1743 = vmatpush1.msra.mxu0 0.0
        %1744 = vmatprep.subr.mxu0 0.0
        %1745 = vmatpush1.msra.mxu0 0.0
        %1746 = vmatprep.subr.mxu0 0.0
        %1747 = vmatpush1.msra.mxu0 0.0
        %1748 = vmatprep.subr.mxu0 0.0
        %1749 = vmatpush1.msra.mxu0 0.0
        %1750 = vmatprep.subr.mxu0 0.0
        %1751 = vmatpush1.msra.mxu0 0.0
        %1752 = vmatprep.subr.mxu0 0.0
        %1753 = vmatpush1.msra.mxu0 0.0
        %1754 = vmatprep.subr.mxu0 0.0
        %1755 = vmatpush1.msra.mxu0 0.0
        %1756 = vmatprep.subr.mxu0 0.0
        %1757 = vmatpush1.msra.mxu0 0.0
        %1758 = vmatprep.mubr.f32.mxu0 0.0
        %1759 = vmatmul.mubr.f32.gmra.mrb[0].mxu0 %v1683
        %v1760 = vpop.f32.mrb[0].mxu0
        %v1761 = vadd.f32 %v1665, %v1760
        %v1762 = vpop.f32.mrb[0].mxu0
        %1763 = vmatprep.mubr.f32.mxu0 0.0
        %1764 = vmatmul.mubr.f32.gmra.mrb[0].mxu0 %v1686
        %v1765 = vpop.f32.mrb[0].mxu0
        %v1766 = vadd.f32 %v1670, %v1765
        %v1767 = vpop.f32.mrb[0].mxu0
        %1768 = vmatprep.mubr.f32.mxu0 0.0
        %1769 = vmatmul.mubr.f32.gmra.mrb[0].mxu0 %v1689
        %v1770 = vpop.f32.mrb[0].mxu0
        %v1771 = vadd.f32 %v1675, %v1770
        %v1772 = vpop.f32.mrb[0].mxu0
        %1773 = vmatprep.mubr.f32.mxu0 0.0
        %1774 = vmatmul.mubr.f32.gmra.mrb[0].mxu0 %v1692
        %v1775 = vpop.f32.mrb[0].mxu0
        %v1776 = vadd.f32 %v1680, %v1775
        %v1777 = vpop.f32.mrb[0].mxu0
        %1778 = vdwg.mxu0
        %v1779 = vmax.f32 %v1761, 0.0
        %v1780 = vmax.f32 %v1766, 0.0
        %v1781 = vmax.f32 %v1771, 0.0
        %v1782 = vmax.f32 %v1776, 0.0
        %v1783 = vld [vmem:[%s9] sm:$0xff]
        %v1784 = vld [vmem:[%s9 + $0x8] sm:$0xff]
        %v1785 = vld [vmem:[%s10] sm:$0xff]
        %v1786 = vld [vmem:[%s10 + $0x8] sm:$0xff]
        %1788 = vset.pattern.permute.xlu0 0
        %1789 = vperm.xlu0 %1788, %v1785
        %v1790 = vpop.permute.xlu0 %1789
        %1793 = vset.pattern.permute.xlu0 0
        %1794 = vperm.xlu0 %1793, %v1786
        %v1795 = vpop.permute.xlu0 %1794
        %v1798 = vsel %vm646, %v1783, 0
        %v1801 = vsel %vm646, %v1784, 0
        %1803 = vmatprep.subr.mxu0 0.0
        %1804 = vmatpush1.msra.mxu0 %v1779
        %1805 = vmatprep.subr.mxu0 0.0
        %1806 = vmatpush1.msra.mxu0 %v1780
        %1807 = vmatprep.subr.mxu0 0.0
        %1808 = vmatpush1.msra.mxu0 %v1781
        %1809 = vmatprep.subr.mxu0 0.0
        %1810 = vmatpush1.msra.mxu0 %v1782
        %1811 = vmatprep.subr.mxu0 0.0
        %1812 = vmatpush1.msra.mxu0 0.0
        %1813 = vmatprep.subr.mxu0 0.0
        %1814 = vmatpush1.msra.mxu0 0.0
        %1815 = vmatprep.subr.mxu0 0.0
        %1816 = vmatpush1.msra.mxu0 0.0
        %1817 = vmatprep.subr.mxu0 0.0
        %1818 = vmatpush1.msra.mxu0 0.0
        %1819 = vmatprep.subr.mxu0 0.0
        %1820 = vmatpush1.msra.mxu0 0.0
        %1821 = vmatprep.subr.mxu0 0.0
        %1822 = vmatpush1.msra.mxu0 0.0
        %1823 = vmatprep.subr.mxu0 0.0
        %1824 = vmatpush1.msra.mxu0 0.0
        %1825 = vmatprep.subr.mxu0 0.0
        %1826 = vmatpush1.msra.mxu0 0.0
        %1827 = vmatprep.subr.mxu0 0.0
        %1828 = vmatpush1.msra.mxu0 0.0
        %1829 = vmatprep.subr.mxu0 0.0
        %1830 = vmatpush1.msra.mxu0 0.0
        %1831 = vmatprep.subr.mxu0 0.0
        %1832 = vmatpush1.msra.mxu0 0.0
        %1833 = vmatprep.subr.mxu0 0.0
        %1834 = vmatpush1.msra.mxu0 0.0
        %1835 = vmatprep.subr.mxu0 0.0
        %1836 = vmatpush1.msra.mxu0 0.0
        %1837 = vmatprep.subr.mxu0 0.0
        %1838 = vmatpush1.msra.mxu0 0.0
        %1839 = vmatprep.subr.mxu0 0.0
        %1840 = vmatpush1.msra.mxu0 0.0
        %1841 = vmatprep.subr.mxu0 0.0
        %1842 = vmatpush1.msra.mxu0 0.0
        %1843 = vmatprep.subr.mxu0 0.0
        %1844 = vmatpush1.msra.mxu0 0.0
        %1845 = vmatprep.subr.mxu0 0.0
        %1846 = vmatpush1.msra.mxu0 0.0
        %1847 = vmatprep.subr.mxu0 0.0
        %1848 = vmatpush1.msra.mxu0 0.0
        %1849 = vmatprep.subr.mxu0 0.0
        %1850 = vmatpush1.msra.mxu0 0.0
        %1851 = vmatprep.subr.mxu0 0.0
        %1852 = vmatpush1.msra.mxu0 0.0
        %1853 = vmatprep.subr.mxu0 0.0
        %1854 = vmatpush1.msra.mxu0 0.0
        %1855 = vmatprep.subr.mxu0 0.0
        %1856 = vmatpush1.msra.mxu0 0.0
        %1857 = vmatprep.subr.mxu0 0.0
        %1858 = vmatpush1.msra.mxu0 0.0
        %1859 = vmatprep.subr.mxu0 0.0
        %1860 = vmatpush1.msra.mxu0 0.0
        %1861 = vmatprep.subr.mxu0 0.0
        %1862 = vmatpush1.msra.mxu0 0.0
        %1863 = vmatprep.subr.mxu0 0.0
        %1864 = vmatpush1.msra.mxu0 0.0
        %1865 = vmatprep.subr.mxu0 0.0
        %1866 = vmatpush1.msra.mxu0 0.0
        %1867 = vmatprep.mubr.f32.mxu0 0.0
        %1868 = vmatmul.mubr.f32.gmra.mrb[0].mxu0 %v1798
        %v1869 = vpop.f32.mrb[0].mxu0
        %v1870 = vadd.f32 %v1790, %v1869
        %v1871 = vpop.f32.mrb[0].mxu0
        %1872 = vmatprep.mubr.f32.mxu0 0.0
        %1873 = vmatmul.mubr.f32.gmra.mrb[0].mxu0 %v1801
        %v1874 = vpop.f32.mrb[0].mxu0
        %v1875 = vadd.f32 %v1795, %v1874
        %v1876 = vpop.f32.mrb[0].mxu0
        %1877 = vdwg.mxu0
        %v1878 = vmax.f32 %v1870, 0.0
        %v1879 = vmax.f32 %v1875, 0.0
        %v1880 = vld [vmem:[%s11] sm:$0x1]
        %v1881 = vld [vmem:[#allocation2] sm:$0x1]
        %1883 = vset.pattern.permute.xlu0 0
        %1884 = vperm.xlu0 %1883, %v1881
        %v1885 = vpop.permute.xlu0 %1884
        %v1887 = vlaneseq
        %v1888 = vshrl.u32 %v1887, 7
        %v1889 = vsub.s32 0, %v1888
        %v1890 = vrot.slane %v1885, %v1889
        %v1892 = vsel %vm508, %v1880, 0
        %1894 = vmatprep.subr.mxu0 0.0
        %1895 = vmatpush1.msra.mxu0 %v1878
        %1896 = vmatprep.subr.mxu0 0.0
        %1897 = vmatpush1.msra.mxu0 %v1879
        %1898 = vmatprep.subr.mxu0 0.0
        %1899 = vmatpush1.msra.mxu0 0.0
        %1900 = vmatprep.subr.mxu0 0.0
        %1901 = vmatpush1.msra.mxu0 0.0
        %1902 = vmatprep.subr.mxu0 0.0
        %1903 = vmatpush1.msra.mxu0 0.0
        %1904 = vmatprep.subr.mxu0 0.0
        %1905 = vmatpush1.msra.mxu0 0.0
        %1906 = vmatprep.subr.mxu0 0.0
        %1907 = vmatpush1.msra.mxu0 0.0
        %1908 = vmatprep.subr.mxu0 0.0
        %1909 = vmatpush1.msra.mxu0 0.0
        %1910 = vmatprep.subr.mxu0 0.0
        %1911 = vmatpush1.msra.mxu0 0.0
        %1912 = vmatprep.subr.mxu0 0.0
        %1913 = vmatpush1.msra.mxu0 0.0
        %1914 = vmatprep.subr.mxu0 0.0
        %1915 = vmatpush1.msra.mxu0 0.0
        %1916 = vmatprep.subr.mxu0 0.0
        %1917 = vmatpush1.msra.mxu0 0.0
        %1918 = vmatprep.subr.mxu0 0.0
        %1919 = vmatpush1.msra.mxu0 0.0
        %1920 = vmatprep.subr.mxu0 0.0
        %1921 = vmatpush1.msra.mxu0 0.0
        %1922 = vmatprep.subr.mxu0 0.0
        %1923 = vmatpush1.msra.mxu0 0.0
        %1924 = vmatprep.subr.mxu0 0.0
        %1925 = vmatpush1.msra.mxu0 0.0
        %1926 = vmatprep.subr.mxu0 0.0
        %1927 = vmatpush1.msra.mxu0 0.0
        %1928 = vmatprep.subr.mxu0 0.0
        %1929 = vmatpush1.msra.mxu0 0.0
        %1930 = vmatprep.subr.mxu0 0.0
        %1931 = vmatpush1.msra.mxu0 0.0
        %1932 = vmatprep.subr.mxu0 0.0
        %1933 = vmatpush1.msra.mxu0 0.0
        %1934 = vmatprep.subr.mxu0 0.0
        %1935 = vmatpush1.msra.mxu0 0.0
        %1936 = vmatprep.subr.mxu0 0.0
        %1937 = vmatpush1.msra.mxu0 0.0
        %1938 = vmatprep.subr.mxu0 0.0
        %1939 = vmatpush1.msra.mxu0 0.0
        %1940 = vmatprep.subr.mxu0 0.0
        %1941 = vmatpush1.msra.mxu0 0.0
        %1942 = vmatprep.subr.mxu0 0.0
        %1943 = vmatpush1.msra.mxu0 0.0
        %1944 = vmatprep.subr.mxu0 0.0
        %1945 = vmatpush1.msra.mxu0 0.0
        %1946 = vmatprep.subr.mxu0 0.0
        %1947 = vmatpush1.msra.mxu0 0.0
        %1948 = vmatprep.subr.mxu0 0.0
        %1949 = vmatpush1.msra.mxu0 0.0
        %1950 = vmatprep.subr.mxu0 0.0
        %1951 = vmatpush1.msra.mxu0 0.0
        %1952 = vmatprep.subr.mxu0 0.0
        %1953 = vmatpush1.msra.mxu0 0.0
        %1954 = vmatprep.subr.mxu0 0.0
        %1955 = vmatpush1.msra.mxu0 0.0
        %1956 = vmatprep.subr.mxu0 0.0
        %1957 = vmatpush1.msra.mxu0 0.0
        %1958 = vmatprep.mubr.f32.mxu0 0.0
        %1959 = vmatmul.mubr.f32.gmra.mrb[0].mxu0 %v1892
        %v1960 = vpop.f32.mrb[0].mxu0
        %v1961 = vadd.f32 %v1890, %v1960
        %v1962 = vpop.f32.mrb[0].mxu0
        %1963 = vdwg.mxu0
        %1964 = vst [vmem:[%s477] sm:$0x1] %v1961
        %s1965 = sand.u32 %s315, 1
        %s1966 = scalar_lea.sflag [#allocation5], %s1965
        %s1967 = sand.u32 %s315, 1
        %s1968 = scalar_lea.vmem [#allocation4], %s1967
        // Predicated region
        $region111: #{tpu_custom_call.1} parent=105 // pred_check
          %p1969 = pneg %p325
        $region112: #{tpu_custom_call.1} parent=105 // pred_check_branch
          %1971 = sbr.rel (%p1969) target = $region114
        $region113: #{tpu_custom_call.1} parent=105 // pred_region
          %s1973 = ssub.s32 16, 16
          %1974 = vsyncadd %s1966, %s1973
          %s1975 = smul.addr %s29, 16
          %s1976 = scalar_lea.hbm %s13, %s1975
          %s1978 = sshll.u32 %s1968, 4
          %s1979 = int_to_ptr.vmem [resolvable:$true] %s1978
          %1981 = dma.vmem_to_hbm [thread:$0]  %s1979, 16, %s1976, %s1966
        $region114: #{tpu_custom_call.1} parent=105 // pred_fallthru
          _
      $region106: #{tpu_custom_call.1} parent=5 // pred_fallthru
        _
      %p1982 = scmp.le.s32.totalorder 2, %s24
      // Predicated region
      $region115: #{tpu_custom_call.1} parent=5 // pred_check
        %p1983 = pneg %p1982
      $region116: #{tpu_custom_call.1} parent=5 // pred_check_branch
        %1985 = sbr.rel (%p1983) target = $region118
      $region117: #{tpu_custom_call.1} parent=5 // pred_region
        %s1986 = ssub.s32 %s24, 2
        // Predicated region
        $region119: #{tpu_custom_call.1} parent=117 // pred_check
          %p1987 = pneg %p331
        $region120: #{tpu_custom_call.1} parent=117 // pred_check_branch
          %1989 = sbr.rel (%p1987) target = $region122
        $region121: #{tpu_custom_call.1} parent=117 // pred_region
          %s1990 = sand.u32 %s316, 1
          %s1991 = scalar_lea.sflag [#allocation5], %s1990
          %s1992 = sand.u32 %s316, 1
          %s1993 = scalar_lea.vmem [#allocation4], %s1992
          %1994 = dma.done %s1991, 16
        $region122: #{tpu_custom_call.1} parent=117 // pred_fallthru
          _
      $region118: #{tpu_custom_call.1} parent=5 // pred_fallthru
        _
    $region6: #{tpu_custom_call.1} parent=1 // loop_footer
      %s28 = sadd.s32 1, %s24
    $region7: #{tpu_custom_call.1} parent=1 // loop_footer_branch
      %23 = sbr.rel target = $region3
    $region8: #{tpu_custom_call.1} parent=1 // loop_exit
      _
    %1995 = vsyncpa [#allocation5], 1
    %s1996 = scalar_lea.sflag [#allocation5], 1
    %1997 = vsyncpa %s1996, 1

</llo_original>
